<compile_context>
chip_gen: v6e
topology: v6e:2x2x1
jax: 0.10.0
libtpu: 0.0.40
codegen_flags: <defaults>
</compile_context>

<pallas_src>
import numpy as np
import jax
import jax.numpy as jnp
from jax import lax
from jax.experimental import pallas as pl
from jax.experimental.pallas import tpu as pltpu

EPS = 1e-5
# tap offsets (kh, kw) in row-major order, matching the flattened HWIO weights
_TAPS = tuple((dh, dw) for dh in (-1, 0, 1) for dw in (-1, 0, 1))

# MXU operand dtype: bf16 on a real TPU (f32 accumulation), f32 otherwise
# (the CPU/interpret runner cannot execute a bf16 x bf16 -> f32 dot).
_MXU_DTYPE = jnp.bfloat16 if jax.default_backend() == "tpu" else jnp.float32


def _make_basic_block_kernel(N, H, W, Cin, P, has_proj):
    L = N * H * W
    cdt = _MXU_DTYPE

    def _shift(x2, off):
        # y[:, m] = x2[:, m + off]; the flattened-axis ends are zero-filled and
        # every cross-row / cross-image read is killed by the tap masks.
        # TODO(synk): on real hardware pltpu.roll(x2, -off, axis=1) + mask would put
        # the shift on the idle XLU slot; kept as concat for interpret portability.
        if off == 0:
            return x2
        C = x2.shape[0]
        z = jnp.zeros((C, abs(off)), x2.dtype)
        if off > 0:
            return jnp.concatenate([x2[:, off:], z], axis=1)
        return jnp.concatenate([z, x2[:, :L + off]], axis=1)

    def _patches(x2c, masks):
        # (C, L) cdt -> (9*C, L) cdt im2col matrix; row order (kh, kw, cin)
        # matches the flattened HWIO weights.
        cols = []
        for t, (dh, dw) in enumerate(_TAPS):
            y = _shift(x2c, dh * W + dw)
            if (dh, dw) != (0, 0):
                y = y * masks[t]
            cols.append(y)
        return jnp.concatenate(cols, axis=0)

    def _bn(x2, gamma, beta):
        # training-mode batchnorm (biased stats over N*H*W), affine form:
        # per-channel scalars first, then only 2 VPU ops per element.
        # TODO(synk): one-pass E[x^2]-E[x]^2 is fine at L=512; switch to a
        # two-pass / partial-sum form when gridding over large L.
        s = jnp.sum(x2, axis=1, keepdims=True)
        ss = jnp.sum(x2 * x2, axis=1, keepdims=True)
        mean = s * (1.0 / L)
        var = ss * (1.0 / L) - mean * mean
        scale = gamma * lax.rsqrt(var + EPS)
        shift = beta - mean * scale
        return x2 * scale + shift

    def kernel(x_ref, ij_ref, w1_ref, w2_ref, g1_ref, b1_ref, g2_ref, b2_ref,
               gs_ref, bs_ref, out_ref, v_ref):
        x2 = x_ref[...]                      # (Cin, L) f32
        ii = ij_ref[0:1, :]                  # (1, L) i32 image-row index
        jj = ij_ref[1:2, :]                  # (1, L) i32 image-col index

        # 0/1 boundary masks for the 8 non-centre taps, built in-kernel from the
        # tiny index vectors (replaces the old (9, L) f32 mask DMA stream).
        one = jnp.ones((), cdt)
        zero = jnp.zeros((), cdt)
        masks = []
        for (dh, dw) in _TAPS:
            if (dh, dw) == (0, 0):
                masks.append(None)
            else:
                valid = ((ii + dh >= 0) & (ii + dh < H) &
                         (jj + dw >= 0) & (jj + dw < W))
                masks.append(jnp.where(valid, one, zero))

        # conv1 (3x3, pad 1) [+ fused 1x1 projection shortcut rows]: one MXU
        # matmul; patches are built directly in the MXU dtype.
        p1 = _patches(x2.astype(cdt), masks)                       # (9*Cin, L)
        h1s = jnp.dot(w1_ref[...], p1, preferred_element_type=jnp.float32)

        h = jnp.maximum(_bn(h1s[:P, :], g1_ref[...], b1_ref[...]), 0.0)   # (P, L)

        # conv2 (3x3, pad 1) -> bn2: one MXU matmul.
        p2 = _patches(h.astype(cdt), masks)                        # (9*P, L)
        h2 = _bn(jnp.dot(w2_ref[...], p2, preferred_element_type=jnp.float32),
                 g2_ref[...], b2_ref[...])                         # (P, L)

        # shortcut: bn of the fused projection rows, or identity (Cin == P).
        sc = _bn(h1s[P:, :], gs_ref[...], bs_ref[...]) if has_proj else x2

        v = h2 + sc
        v_ref[...] = v                       # PRE-relu residual sum (PyTorch aliasing)
        out_ref[...] = jnp.maximum(v, 0.0)   # lane-dense (P, L) stores

    return kernel


def init_params(key, in_planes, planes, stride):
    has_proj = (stride != 1) or (in_planes != planes)
    ks = jax.random.split(key, 9)

    def nrm(k, shape, scale=0.1):
        return scale * jax.random.normal(k, shape, jnp.float32)

    params = dict(
        w1=nrm(ks[0], (3, 3, in_planes, planes)),    # HWIO
        w2=nrm(ks[1], (3, 3, planes, planes)),       # HWIO
        g1=1.0 + nrm(ks[2], (planes,)), b1=nrm(ks[3], (planes,)),
        g2=1.0 + nrm(ks[4], (planes,)), b2=nrm(ks[5], (planes,)),
    )
    if has_proj:
        params.update(ws=nrm(ks[6], (in_planes, planes)),          # 1x1 conv (Cin, P)
                      gs=1.0 + nrm(ks[7], (planes,)),
                      bs=nrm(ks[8], (planes,)))
    return params, has_proj


def basic_block_forward(inputs, params, in_planes, planes, stride):
    x_nchw, v_in, rand_vec = inputs
    del v_in  # the PyTorch forward overwrites v before any use
    if stride != 1:
        # TODO(synk): stride>1 (strided conv1 + strided shortcut sampling) is not
        # implemented in the lane-flattened layout.
        raise NotImplementedError("BasicBlock Pallas kernel supports stride=1 only")

    x = x_nchw.astype(jnp.float32)
    N, Cin, H, W = x.shape
    assert Cin == in_planes
    P = planes
    L = N * H * W
    has_proj = (stride != 1) or (in_planes != planes)

    # channels -> sublanes, flattened N*H*W -> lanes (L = 512 -> lane-dense).
    # TODO(synk): when chaining blocks, keep activations in this (C, L) layout across
    # blocks so these NCHW transposes don't add an extra HBM round trip per block.
    xt = jnp.transpose(x, (1, 0, 2, 3)).reshape(Cin, L)

    # per-lane image row/col indices (2, L) i32 — the 8 boundary masks are rebuilt
    # in-kernel from these (18x less DMA than a (9, L) f32 mask slab).
    m = np.arange(L)
    ij = jnp.asarray(np.stack([(m % (H * W)) // W, m % W]).astype(np.int32))

    w1_t = params["w1"].reshape(9 * Cin, P).T                       # (P, 9*Cin)
    w2_t = params["w2"].reshape(9 * P, P).T                         # (P, 9*P)
    if has_proj:
        # fuse the 1x1 projection into conv1's matmul: its weights occupy the
        # centre-tap columns of P extra output rows.
        ws_rows = jnp.zeros((P, 9 * Cin), jnp.float32)
        ws_rows = ws_rows.at[:, 4 * Cin:5 * Cin].set(params["ws"].T)
        w1_aug = jnp.concatenate([w1_t, ws_rows], axis=0)           # (2P, 9*Cin)
        gs, bs = params["gs"].reshape(P, 1), params["bs"].reshape(P, 1)
    else:
        w1_aug = w1_t
        gs = bs = jnp.zeros((1, 1), jnp.float32)
    w1_aug = w1_aug.astype(_MXU_DTYPE)
    w2_t = w2_t.astype(_MXU_DTYPE)

    kernel = _make_basic_block_kernel(N, H, W, Cin, P, has_proj)
    vmem = pl.BlockSpec(memory_space=pltpu.MemorySpace.VMEM)
    # TODO(synk): at real ResNet sizes, grid over L row-tiles (lane tile >= 512,
    # multiple of 128) with the leading axis "parallel" for v7x's two TensorCores,
    # a partial-sum BN, and a VMEM budget from pltpu.get_tpu_info() (64 MiB on v7x);
    # the test shape fits whole so no grid / vmem_limit override is needed.
    out_t, v_t = pl.pallas_call(
        kernel,
        out_shape=(jax.ShapeDtypeStruct((P, L), jnp.float32),
                   jax.ShapeDtypeStruct((P, L), jnp.float32)),
        in_specs=[vmem] * 10,
        out_specs=(vmem, vmem),
    )(xt, ij, w1_aug, w2_t,
      params["g1"].reshape(P, 1), params["b1"].reshape(P, 1),
      params["g2"].reshape(P, 1), params["b2"].reshape(P, 1), gs, bs)

    out = jnp.transpose(out_t.reshape(P, N, H, W), (1, 0, 2, 3))    # -> NCHW
    v = jnp.transpose(v_t.reshape(P, N, H, W), (1, 0, 2, 3))
    return out, v, rand_vec


def _reference(x_nchw, params, stride, has_proj):
    """Pure-JAX reference (training-mode BN; same MXU operand dtype as the kernel)."""
    x = x_nchw.astype(jnp.float32)
    cdt = _MXU_DTYPE

    def conv3x3(v, w, s):
        return lax.conv_general_dilated(v.astype(cdt), w.astype(cdt), (s, s),
                                        ((1, 1), (1, 1)),
                                        dimension_numbers=("NCHW", "HWIO", "NCHW"),
                                        preferred_element_type=jnp.float32)

    def bn(v, g, b):
        mean = jnp.mean(v, axis=(0, 2, 3), keepdims=True)
        var = jnp.mean((v - mean) ** 2, axis=(0, 2, 3), keepdims=True)
        return ((v - mean) * lax.rsqrt(var + EPS) * g.reshape(1, -1, 1, 1)
                + b.reshape(1, -1, 1, 1))

    h = jax.nn.relu(bn(conv3x3(x, params["w1"], stride), params["g1"], params["b1"]))
    h2 = bn(conv3x3(h, params["w2"], 1), params["g2"], params["b2"])
    if has_proj:
        sc = jnp.einsum("nchw,cp->nphw", x[:, :, ::stride, ::stride].astype(cdt),
                        params["ws"].astype(cdt), preferred_element_type=jnp.float32)
        sc = bn(sc, params["gs"], params["bs"])
    else:
        sc = x[:, :, ::stride, ::stride]
    v = h2 + sc
    return jax.nn.relu(v), v


if __name__ == "__main__":
    key = jax.random.PRNGKey(0)
    k_x, k_p, k_r = jax.random.split(key, 3)

    in_planes, planes, stride = 4, 8, 1      # projection shortcut active (Cin != planes)
    N, H, W = 2, 16, 16
    x = jax.random.normal(k_x, (N, in_planes, H, W), jnp.float32)    # NCHW, like PyTorch
    v_in = jnp.zeros((1,), jnp.float32)                              # ignored by forward
    rand_vec = jax.random.normal(k_r, (8,), jnp.float32)

    params, has_proj = init_params(k_p, in_planes, planes, stride)

    out, v, rv = basic_block_forward((x, v_in, rand_vec), params,
                                     in_planes, planes, stride)
    out, v, rv = jax.block_until_ready((out, v, rv))

    out_ref, v_ref = _reference(x, params, stride, has_proj)
    assert out.shape == (N, planes, H, W) and v.shape == (N, planes, H, W)
    # kernel and reference use the same MXU operand dtype (bf16 on TPU, f32 on the
    # interpret runner); residual differences are summation-order / bf16 re-rounding.
    assert jnp.allclose(out, out_ref, atol=1e-2, rtol=1e-2), \
        float(jnp.max(jnp.abs(out - out_ref)))
    assert jnp.allclose(v, v_ref, atol=1e-2, rtol=1e-2), \
        float(jnp.max(jnp.abs(v - v_ref)))
    assert bool(jnp.all(rv == rand_vec))

    print("KERNEL_OK")
</pallas_src>

<mosaic_0001>
module attributes {stable_mosaic.version = 11 : i64} {
  func.func @kernel(%arg0: memref<4x512xf32, #tpu.memory_space<vmem>>, %arg1: memref<2x512xi32, #tpu.memory_space<vmem>>, %arg2: memref<16x36xf32, #tpu.memory_space<vmem>>, %arg3: memref<8x72xf32, #tpu.memory_space<vmem>>, %arg4: memref<8x1xf32, #tpu.memory_space<vmem>>, %arg5: memref<8x1xf32, #tpu.memory_space<vmem>>, %arg6: memref<8x1xf32, #tpu.memory_space<vmem>>, %arg7: memref<8x1xf32, #tpu.memory_space<vmem>>, %arg8: memref<8x1xf32, #tpu.memory_space<vmem>>, %arg9: memref<8x1xf32, #tpu.memory_space<vmem>>, %arg10: memref<8x512xf32, #tpu.memory_space<vmem>>, %arg11: memref<8x512xf32, #tpu.memory_space<vmem>>) attributes {dimension_semantics = [], scalar_prefetch = 0 : i64, scratch_operands = 0 : i64, tpu.core_type = #tpu.core_type<tc>} {
    %c0 = arith.constant 0 : index
    %c0_0 = arith.constant 0 : index
    %0 = vector.load %arg0[%c0, %c0_0] : memref<4x512xf32, #tpu.memory_space<vmem>>, vector<4x512xf32>
    %c0_1 = arith.constant 0 : index
    %c0_2 = arith.constant 0 : index
    %1 = vector.load %arg1[%c0_1, %c0_2] : memref<2x512xi32, #tpu.memory_space<vmem>>, vector<1x512xi32>
    %c1 = arith.constant 1 : index
    %c0_3 = arith.constant 0 : index
    %2 = vector.load %arg1[%c1, %c0_3] : memref<2x512xi32, #tpu.memory_space<vmem>>, vector<1x512xi32>
    %c-1_i32 = arith.constant -1 : i32
    %3 = vector.broadcast %c-1_i32 : i32 to vector<1x512xi32>
    %4 = arith.addi %1, %3 : vector<1x512xi32>
    %c0_i32 = arith.constant 0 : i32
    %5 = vector.broadcast %c0_i32 : i32 to vector<1x512xi32>
    %6 = arith.cmpi sge, %4, %5 : vector<1x512xi32>
    %c-1_i32_4 = arith.constant -1 : i32
    %7 = vector.broadcast %c-1_i32_4 : i32 to vector<1x512xi32>
    %8 = arith.addi %1, %7 : vector<1x512xi32>
    %c16_i32 = arith.constant 16 : i32
    %9 = vector.broadcast %c16_i32 : i32 to vector<1x512xi32>
    %10 = arith.cmpi slt, %8, %9 : vector<1x512xi32>
    %11 = arith.andi %6, %10 : vector<1x512xi1>
    %c-1_i32_5 = arith.constant -1 : i32
    %12 = vector.broadcast %c-1_i32_5 : i32 to vector<1x512xi32>
    %13 = arith.addi %2, %12 : vector<1x512xi32>
    %c0_i32_6 = arith.constant 0 : i32
    %14 = vector.broadcast %c0_i32_6 : i32 to vector<1x512xi32>
    %15 = arith.cmpi sge, %13, %14 : vector<1x512xi32>
    %16 = arith.andi %11, %15 : vector<1x512xi1>
    %c-1_i32_7 = arith.constant -1 : i32
    %17 = vector.broadcast %c-1_i32_7 : i32 to vector<1x512xi32>
    %18 = arith.addi %2, %17 : vector<1x512xi32>
    %c16_i32_8 = arith.constant 16 : i32
    %19 = vector.broadcast %c16_i32_8 : i32 to vector<1x512xi32>
    %20 = arith.cmpi slt, %18, %19 : vector<1x512xi32>
    %21 = arith.andi %16, %20 : vector<1x512xi1>
    %cst = arith.constant 1.000000e+00 : f32
    %cst_9 = arith.constant 0.000000e+00 : f32
    %22 = vector.broadcast %cst : f32 to vector<1x512xf32>
    %23 = vector.broadcast %cst_9 : f32 to vector<1x512xf32>
    %24 = arith.select %21, %22, %23 : vector<1x512xi1>, vector<1x512xf32>
    %c-1_i32_10 = arith.constant -1 : i32
    %25 = vector.broadcast %c-1_i32_10 : i32 to vector<1x512xi32>
    %26 = arith.addi %1, %25 : vector<1x512xi32>
    %c0_i32_11 = arith.constant 0 : i32
    %27 = vector.broadcast %c0_i32_11 : i32 to vector<1x512xi32>
    %28 = arith.cmpi sge, %26, %27 : vector<1x512xi32>
    %c-1_i32_12 = arith.constant -1 : i32
    %29 = vector.broadcast %c-1_i32_12 : i32 to vector<1x512xi32>
    %30 = arith.addi %1, %29 : vector<1x512xi32>
    %c16_i32_13 = arith.constant 16 : i32
    %31 = vector.broadcast %c16_i32_13 : i32 to vector<1x512xi32>
    %32 = arith.cmpi slt, %30, %31 : vector<1x512xi32>
    %33 = arith.andi %28, %32 : vector<1x512xi1>
    %c0_i32_14 = arith.constant 0 : i32
    %34 = vector.broadcast %c0_i32_14 : i32 to vector<1x512xi32>
    %35 = arith.addi %2, %34 : vector<1x512xi32>
    %c0_i32_15 = arith.constant 0 : i32
    %36 = vector.broadcast %c0_i32_15 : i32 to vector<1x512xi32>
    %37 = arith.cmpi sge, %35, %36 : vector<1x512xi32>
    %38 = arith.andi %33, %37 : vector<1x512xi1>
    %c0_i32_16 = arith.constant 0 : i32
    %39 = vector.broadcast %c0_i32_16 : i32 to vector<1x512xi32>
    %40 = arith.addi %2, %39 : vector<1x512xi32>
    %c16_i32_17 = arith.constant 16 : i32
    %41 = vector.broadcast %c16_i32_17 : i32 to vector<1x512xi32>
    %42 = arith.cmpi slt, %40, %41 : vector<1x512xi32>
    %43 = arith.andi %38, %42 : vector<1x512xi1>
    %cst_18 = arith.constant 1.000000e+00 : f32
    %cst_19 = arith.constant 0.000000e+00 : f32
    %44 = vector.broadcast %cst_18 : f32 to vector<1x512xf32>
    %45 = vector.broadcast %cst_19 : f32 to vector<1x512xf32>
    %46 = arith.select %43, %44, %45 : vector<1x512xi1>, vector<1x512xf32>
    %c-1_i32_20 = arith.constant -1 : i32
    %47 = vector.broadcast %c-1_i32_20 : i32 to vector<1x512xi32>
    %48 = arith.addi %1, %47 : vector<1x512xi32>
    %c0_i32_21 = arith.constant 0 : i32
    %49 = vector.broadcast %c0_i32_21 : i32 to vector<1x512xi32>
    %50 = arith.cmpi sge, %48, %49 : vector<1x512xi32>
    %c-1_i32_22 = arith.constant -1 : i32
    %51 = vector.broadcast %c-1_i32_22 : i32 to vector<1x512xi32>
    %52 = arith.addi %1, %51 : vector<1x512xi32>
    %c16_i32_23 = arith.constant 16 : i32
    %53 = vector.broadcast %c16_i32_23 : i32 to vector<1x512xi32>
    %54 = arith.cmpi slt, %52, %53 : vector<1x512xi32>
    %55 = arith.andi %50, %54 : vector<1x512xi1>
    %c1_i32 = arith.constant 1 : i32
    %56 = vector.broadcast %c1_i32 : i32 to vector<1x512xi32>
    %57 = arith.addi %2, %56 : vector<1x512xi32>
    %c0_i32_24 = arith.constant 0 : i32
    %58 = vector.broadcast %c0_i32_24 : i32 to vector<1x512xi32>
    %59 = arith.cmpi sge, %57, %58 : vector<1x512xi32>
    %60 = arith.andi %55, %59 : vector<1x512xi1>
    %c1_i32_25 = arith.constant 1 : i32
    %61 = vector.broadcast %c1_i32_25 : i32 to vector<1x512xi32>
    %62 = arith.addi %2, %61 : vector<1x512xi32>
    %c16_i32_26 = arith.constant 16 : i32
    %63 = vector.broadcast %c16_i32_26 : i32 to vector<1x512xi32>
    %64 = arith.cmpi slt, %62, %63 : vector<1x512xi32>
    %65 = arith.andi %60, %64 : vector<1x512xi1>
    %cst_27 = arith.constant 1.000000e+00 : f32
    %cst_28 = arith.constant 0.000000e+00 : f32
    %66 = vector.broadcast %cst_27 : f32 to vector<1x512xf32>
    %67 = vector.broadcast %cst_28 : f32 to vector<1x512xf32>
    %68 = arith.select %65, %66, %67 : vector<1x512xi1>, vector<1x512xf32>
    %c0_i32_29 = arith.constant 0 : i32
    %69 = vector.broadcast %c0_i32_29 : i32 to vector<1x512xi32>
    %70 = arith.addi %1, %69 : vector<1x512xi32>
    %c0_i32_30 = arith.constant 0 : i32
    %71 = vector.broadcast %c0_i32_30 : i32 to vector<1x512xi32>
    %72 = arith.cmpi sge, %70, %71 : vector<1x512xi32>
    %c0_i32_31 = arith.constant 0 : i32
    %73 = vector.broadcast %c0_i32_31 : i32 to vector<1x512xi32>
    %74 = arith.addi %1, %73 : vector<1x512xi32>
    %c16_i32_32 = arith.constant 16 : i32
    %75 = vector.broadcast %c16_i32_32 : i32 to vector<1x512xi32>
    %76 = arith.cmpi slt, %74, %75 : vector<1x512xi32>
    %77 = arith.andi %72, %76 : vector<1x512xi1>
    %c-1_i32_33 = arith.constant -1 : i32
    %78 = vector.broadcast %c-1_i32_33 : i32 to vector<1x512xi32>
    %79 = arith.addi %2, %78 : vector<1x512xi32>
    %c0_i32_34 = arith.constant 0 : i32
    %80 = vector.broadcast %c0_i32_34 : i32 to vector<1x512xi32>
    %81 = arith.cmpi sge, %79, %80 : vector<1x512xi32>
    %82 = arith.andi %77, %81 : vector<1x512xi1>
    %c-1_i32_35 = arith.constant -1 : i32
    %83 = vector.broadcast %c-1_i32_35 : i32 to vector<1x512xi32>
    %84 = arith.addi %2, %83 : vector<1x512xi32>
    %c16_i32_36 = arith.constant 16 : i32
    %85 = vector.broadcast %c16_i32_36 : i32 to vector<1x512xi32>
    %86 = arith.cmpi slt, %84, %85 : vector<1x512xi32>
    %87 = arith.andi %82, %86 : vector<1x512xi1>
    %cst_37 = arith.constant 1.000000e+00 : f32
    %cst_38 = arith.constant 0.000000e+00 : f32
    %88 = vector.broadcast %cst_37 : f32 to vector<1x512xf32>
    %89 = vector.broadcast %cst_38 : f32 to vector<1x512xf32>
    %90 = arith.select %87, %88, %89 : vector<1x512xi1>, vector<1x512xf32>
    %c0_i32_39 = arith.constant 0 : i32
    %91 = vector.broadcast %c0_i32_39 : i32 to vector<1x512xi32>
    %92 = arith.addi %1, %91 : vector<1x512xi32>
    %c0_i32_40 = arith.constant 0 : i32
    %93 = vector.broadcast %c0_i32_40 : i32 to vector<1x512xi32>
    %94 = arith.cmpi sge, %92, %93 : vector<1x512xi32>
    %c0_i32_41 = arith.constant 0 : i32
    %95 = vector.broadcast %c0_i32_41 : i32 to vector<1x512xi32>
    %96 = arith.addi %1, %95 : vector<1x512xi32>
    %c16_i32_42 = arith.constant 16 : i32
    %97 = vector.broadcast %c16_i32_42 : i32 to vector<1x512xi32>
    %98 = arith.cmpi slt, %96, %97 : vector<1x512xi32>
    %99 = arith.andi %94, %98 : vector<1x512xi1>
    %c1_i32_43 = arith.constant 1 : i32
    %100 = vector.broadcast %c1_i32_43 : i32 to vector<1x512xi32>
    %101 = arith.addi %2, %100 : vector<1x512xi32>
    %c0_i32_44 = arith.constant 0 : i32
    %102 = vector.broadcast %c0_i32_44 : i32 to vector<1x512xi32>
    %103 = arith.cmpi sge, %101, %102 : vector<1x512xi32>
    %104 = arith.andi %99, %103 : vector<1x512xi1>
    %c1_i32_45 = arith.constant 1 : i32
    %105 = vector.broadcast %c1_i32_45 : i32 to vector<1x512xi32>
    %106 = arith.addi %2, %105 : vector<1x512xi32>
    %c16_i32_46 = arith.constant 16 : i32
    %107 = vector.broadcast %c16_i32_46 : i32 to vector<1x512xi32>
    %108 = arith.cmpi slt, %106, %107 : vector<1x512xi32>
    %109 = arith.andi %104, %108 : vector<1x512xi1>
    %cst_47 = arith.constant 1.000000e+00 : f32
    %cst_48 = arith.constant 0.000000e+00 : f32
    %110 = vector.broadcast %cst_47 : f32 to vector<1x512xf32>
    %111 = vector.broadcast %cst_48 : f32 to vector<1x512xf32>
    %112 = arith.select %109, %110, %111 : vector<1x512xi1>, vector<1x512xf32>
    %c1_i32_49 = arith.constant 1 : i32
    %113 = vector.broadcast %c1_i32_49 : i32 to vector<1x512xi32>
    %114 = arith.addi %1, %113 : vector<1x512xi32>
    %c0_i32_50 = arith.constant 0 : i32
    %115 = vector.broadcast %c0_i32_50 : i32 to vector<1x512xi32>
    %116 = arith.cmpi sge, %114, %115 : vector<1x512xi32>
    %c1_i32_51 = arith.constant 1 : i32
    %117 = vector.broadcast %c1_i32_51 : i32 to vector<1x512xi32>
    %118 = arith.addi %1, %117 : vector<1x512xi32>
    %c16_i32_52 = arith.constant 16 : i32
    %119 = vector.broadcast %c16_i32_52 : i32 to vector<1x512xi32>
    %120 = arith.cmpi slt, %118, %119 : vector<1x512xi32>
    %121 = arith.andi %116, %120 : vector<1x512xi1>
    %c-1_i32_53 = arith.constant -1 : i32
    %122 = vector.broadcast %c-1_i32_53 : i32 to vector<1x512xi32>
    %123 = arith.addi %2, %122 : vector<1x512xi32>
    %c0_i32_54 = arith.constant 0 : i32
    %124 = vector.broadcast %c0_i32_54 : i32 to vector<1x512xi32>
    %125 = arith.cmpi sge, %123, %124 : vector<1x512xi32>
    %126 = arith.andi %121, %125 : vector<1x512xi1>
    %c-1_i32_55 = arith.constant -1 : i32
    %127 = vector.broadcast %c-1_i32_55 : i32 to vector<1x512xi32>
    %128 = arith.addi %2, %127 : vector<1x512xi32>
    %c16_i32_56 = arith.constant 16 : i32
    %129 = vector.broadcast %c16_i32_56 : i32 to vector<1x512xi32>
    %130 = arith.cmpi slt, %128, %129 : vector<1x512xi32>
    %131 = arith.andi %126, %130 : vector<1x512xi1>
    %cst_57 = arith.constant 1.000000e+00 : f32
    %cst_58 = arith.constant 0.000000e+00 : f32
    %132 = vector.broadcast %cst_57 : f32 to vector<1x512xf32>
    %133 = vector.broadcast %cst_58 : f32 to vector<1x512xf32>
    %134 = arith.select %131, %132, %133 : vector<1x512xi1>, vector<1x512xf32>
    %c1_i32_59 = arith.constant 1 : i32
    %135 = vector.broadcast %c1_i32_59 : i32 to vector<1x512xi32>
    %136 = arith.addi %1, %135 : vector<1x512xi32>
    %c0_i32_60 = arith.constant 0 : i32
    %137 = vector.broadcast %c0_i32_60 : i32 to vector<1x512xi32>
    %138 = arith.cmpi sge, %136, %137 : vector<1x512xi32>
    %c1_i32_61 = arith.constant 1 : i32
    %139 = vector.broadcast %c1_i32_61 : i32 to vector<1x512xi32>
    %140 = arith.addi %1, %139 : vector<1x512xi32>
    %c16_i32_62 = arith.constant 16 : i32
    %141 = vector.broadcast %c16_i32_62 : i32 to vector<1x512xi32>
    %142 = arith.cmpi slt, %140, %141 : vector<1x512xi32>
    %143 = arith.andi %138, %142 : vector<1x512xi1>
    %c0_i32_63 = arith.constant 0 : i32
    %144 = vector.broadcast %c0_i32_63 : i32 to vector<1x512xi32>
    %145 = arith.addi %2, %144 : vector<1x512xi32>
    %c0_i32_64 = arith.constant 0 : i32
    %146 = vector.broadcast %c0_i32_64 : i32 to vector<1x512xi32>
    %147 = arith.cmpi sge, %145, %146 : vector<1x512xi32>
    %148 = arith.andi %143, %147 : vector<1x512xi1>
    %c0_i32_65 = arith.constant 0 : i32
    %149 = vector.broadcast %c0_i32_65 : i32 to vector<1x512xi32>
    %150 = arith.addi %2, %149 : vector<1x512xi32>
    %c16_i32_66 = arith.constant 16 : i32
    %151 = vector.broadcast %c16_i32_66 : i32 to vector<1x512xi32>
    %152 = arith.cmpi slt, %150, %151 : vector<1x512xi32>
    %153 = arith.andi %148, %152 : vector<1x512xi1>
    %cst_67 = arith.constant 1.000000e+00 : f32
    %cst_68 = arith.constant 0.000000e+00 : f32
    %154 = vector.broadcast %cst_67 : f32 to vector<1x512xf32>
    %155 = vector.broadcast %cst_68 : f32 to vector<1x512xf32>
    %156 = arith.select %153, %154, %155 : vector<1x512xi1>, vector<1x512xf32>
    %c1_i32_69 = arith.constant 1 : i32
    %157 = vector.broadcast %c1_i32_69 : i32 to vector<1x512xi32>
    %158 = arith.addi %1, %157 : vector<1x512xi32>
    %c0_i32_70 = arith.constant 0 : i32
    %159 = vector.broadcast %c0_i32_70 : i32 to vector<1x512xi32>
    %160 = arith.cmpi sge, %158, %159 : vector<1x512xi32>
    %c1_i32_71 = arith.constant 1 : i32
    %161 = vector.broadcast %c1_i32_71 : i32 to vector<1x512xi32>
    %162 = arith.addi %1, %161 : vector<1x512xi32>
    %c16_i32_72 = arith.constant 16 : i32
    %163 = vector.broadcast %c16_i32_72 : i32 to vector<1x512xi32>
    %164 = arith.cmpi slt, %162, %163 : vector<1x512xi32>
    %165 = arith.andi %160, %164 : vector<1x512xi1>
    %c1_i32_73 = arith.constant 1 : i32
    %166 = vector.broadcast %c1_i32_73 : i32 to vector<1x512xi32>
    %167 = arith.addi %2, %166 : vector<1x512xi32>
    %c0_i32_74 = arith.constant 0 : i32
    %168 = vector.broadcast %c0_i32_74 : i32 to vector<1x512xi32>
    %169 = arith.cmpi sge, %167, %168 : vector<1x512xi32>
    %170 = arith.andi %165, %169 : vector<1x512xi1>
    %c1_i32_75 = arith.constant 1 : i32
    %171 = vector.broadcast %c1_i32_75 : i32 to vector<1x512xi32>
    %172 = arith.addi %2, %171 : vector<1x512xi32>
    %c16_i32_76 = arith.constant 16 : i32
    %173 = vector.broadcast %c16_i32_76 : i32 to vector<1x512xi32>
    %174 = arith.cmpi slt, %172, %173 : vector<1x512xi32>
    %175 = arith.andi %170, %174 : vector<1x512xi1>
    %cst_77 = arith.constant 1.000000e+00 : f32
    %cst_78 = arith.constant 0.000000e+00 : f32
    %176 = vector.broadcast %cst_77 : f32 to vector<1x512xf32>
    %177 = vector.broadcast %cst_78 : f32 to vector<1x512xf32>
    %178 = arith.select %175, %176, %177 : vector<1x512xi1>, vector<1x512xf32>
    %cst_79 = arith.constant 0.000000e+00 : f32
    %179 = vector.broadcast %cst_79 : f32 to vector<4x17xf32>
    %180 = vector.extract_strided_slice %0 {offsets = [0, 0], sizes = [4, 495], strides = [1, 1]} : vector<4x512xf32> to vector<4x495xf32>
    %181 = tpu.concatenate %179, %180 in 1 : vector<4x17xf32>, vector<4x495xf32> -> vector<4x512xf32>
    %182 = vector.broadcast %24 : vector<1x512xf32> to vector<4x512xf32>
    %183 = arith.mulf %181, %182 : vector<4x512xf32>
    %cst_80 = arith.constant 0.000000e+00 : f32
    %184 = vector.broadcast %cst_80 : f32 to vector<4x16xf32>
    %185 = vector.extract_strided_slice %0 {offsets = [0, 0], sizes = [4, 496], strides = [1, 1]} : vector<4x512xf32> to vector<4x496xf32>
    %186 = tpu.concatenate %184, %185 in 1 : vector<4x16xf32>, vector<4x496xf32> -> vector<4x512xf32>
    %187 = vector.broadcast %46 : vector<1x512xf32> to vector<4x512xf32>
    %188 = arith.mulf %186, %187 : vector<4x512xf32>
    %cst_81 = arith.constant 0.000000e+00 : f32
    %189 = vector.broadcast %cst_81 : f32 to vector<4x15xf32>
    %190 = vector.extract_strided_slice %0 {offsets = [0, 0], sizes = [4, 497], strides = [1, 1]} : vector<4x512xf32> to vector<4x497xf32>
    %191 = tpu.concatenate %189, %190 in 1 : vector<4x15xf32>, vector<4x497xf32> -> vector<4x512xf32>
    %192 = vector.broadcast %68 : vector<1x512xf32> to vector<4x512xf32>
    %193 = arith.mulf %191, %192 : vector<4x512xf32>
    %cst_82 = arith.constant 0.000000e+00 : f32
    %194 = vector.broadcast %cst_82 : f32 to vector<4x1xf32>
    %195 = vector.extract_strided_slice %0 {offsets = [0, 0], sizes = [4, 511], strides = [1, 1]} : vector<4x512xf32> to vector<4x511xf32>
    %196 = tpu.concatenate %194, %195 in 1 : vector<4x1xf32>, vector<4x511xf32> -> vector<4x512xf32>
    %197 = vector.broadcast %90 : vector<1x512xf32> to vector<4x512xf32>
    %198 = arith.mulf %196, %197 : vector<4x512xf32>
    %cst_83 = arith.constant 0.000000e+00 : f32
    %199 = vector.broadcast %cst_83 : f32 to vector<4x1xf32>
    %200 = vector.extract_strided_slice %0 {offsets = [0, 1], sizes = [4, 511], strides = [1, 1]} : vector<4x512xf32> to vector<4x511xf32>
    %201 = tpu.concatenate %200, %199 in 1 : vector<4x511xf32>, vector<4x1xf32> -> vector<4x512xf32>
    %202 = vector.broadcast %112 : vector<1x512xf32> to vector<4x512xf32>
    %203 = arith.mulf %201, %202 : vector<4x512xf32>
    %cst_84 = arith.constant 0.000000e+00 : f32
    %204 = vector.broadcast %cst_84 : f32 to vector<4x15xf32>
    %205 = vector.extract_strided_slice %0 {offsets = [0, 15], sizes = [4, 497], strides = [1, 1]} : vector<4x512xf32> to vector<4x497xf32>
    %206 = tpu.concatenate %205, %204 in 1 : vector<4x497xf32>, vector<4x15xf32> -> vector<4x512xf32>
    %207 = vector.broadcast %134 : vector<1x512xf32> to vector<4x512xf32>
    %208 = arith.mulf %206, %207 : vector<4x512xf32>
    %cst_85 = arith.constant 0.000000e+00 : f32
    %209 = vector.broadcast %cst_85 : f32 to vector<4x16xf32>
    %210 = vector.extract_strided_slice %0 {offsets = [0, 16], sizes = [4, 496], strides = [1, 1]} : vector<4x512xf32> to vector<4x496xf32>
    %211 = tpu.concatenate %210, %209 in 1 : vector<4x496xf32>, vector<4x16xf32> -> vector<4x512xf32>
    %212 = vector.broadcast %156 : vector<1x512xf32> to vector<4x512xf32>
    %213 = arith.mulf %211, %212 : vector<4x512xf32>
    %cst_86 = arith.constant 0.000000e+00 : f32
    %214 = vector.broadcast %cst_86 : f32 to vector<4x17xf32>
    %215 = vector.extract_strided_slice %0 {offsets = [0, 17], sizes = [4, 495], strides = [1, 1]} : vector<4x512xf32> to vector<4x495xf32>
    %216 = tpu.concatenate %215, %214 in 1 : vector<4x495xf32>, vector<4x17xf32> -> vector<4x512xf32>
    %217 = vector.broadcast %178 : vector<1x512xf32> to vector<4x512xf32>
    %218 = arith.mulf %216, %217 : vector<4x512xf32>
    %219 = tpu.concatenate %183, %188, %193, %198, %0, %203, %208, %213, %218 in 0 : vector<4x512xf32>, vector<4x512xf32>, vector<4x512xf32>, vector<4x512xf32>, vector<4x512xf32>, vector<4x512xf32>, vector<4x512xf32>, vector<4x512xf32>, vector<4x512xf32> -> vector<36x512xf32>
    %c0_87 = arith.constant 0 : index
    %c0_88 = arith.constant 0 : index
    %220 = vector.load %arg2[%c0_87, %c0_88] : memref<16x36xf32, #tpu.memory_space<vmem>>, vector<16x36xf32>
    %cst_89 = arith.constant dense<0.000000e+00> : vector<16x512xf32>
    %221 = tpu.matmul %220, %219, %cst_89 {dimension_numbers = #tpu.dot_dimension_numbers<[1], [0], [0], [1], [0, 0, 1, 1], [], []>} : vector<16x36xf32>, vector<36x512xf32>, vector<16x512xf32> -> vector<16x512xf32>
    %222 = vector.extract_strided_slice %221 {offsets = [0, 0], sizes = [8, 512], strides = [1, 1]} : vector<16x512xf32> to vector<8x512xf32>
    %c0_90 = arith.constant 0 : index
    %c0_91 = arith.constant 0 : index
    %223 = vector.load %arg4[%c0_90, %c0_91] : memref<8x1xf32, #tpu.memory_space<vmem>>, vector<8x1xf32>
    %c0_92 = arith.constant 0 : index
    %c0_93 = arith.constant 0 : index
    %224 = vector.load %arg5[%c0_92, %c0_93] : memref<8x1xf32, #tpu.memory_space<vmem>>, vector<8x1xf32>
    %cst_94 = arith.constant dense<0.000000e+00> : vector<8xf32>
    %225 = vector.multi_reduction <add>, %222, %cst_94 [1] : vector<8x512xf32> to vector<8xf32>
    %226 = vector.shape_cast %225 : vector<8xf32> to vector<8x1xf32>
    %227 = arith.mulf %222, %222 : vector<8x512xf32>
    %cst_95 = arith.constant dense<0.000000e+00> : vector<8xf32>
    %228 = vector.multi_reduction <add>, %227, %cst_95 [1] : vector<8x512xf32> to vector<8xf32>
    %229 = vector.shape_cast %228 : vector<8xf32> to vector<8x1xf32>
    %cst_96 = arith.constant 0.001953125 : f32
    %230 = vector.broadcast %cst_96 : f32 to vector<8x1xf32>
    %231 = arith.mulf %226, %230 : vector<8x1xf32>
    %cst_97 = arith.constant 0.001953125 : f32
    %232 = vector.broadcast %cst_97 : f32 to vector<8x1xf32>
    %233 = arith.mulf %229, %232 : vector<8x1xf32>
    %234 = arith.mulf %231, %231 : vector<8x1xf32>
    %235 = arith.subf %233, %234 : vector<8x1xf32>
    %cst_98 = arith.constant 9.99999974E-6 : f32
    %236 = vector.broadcast %cst_98 : f32 to vector<8x1xf32>
    %237 = arith.addf %235, %236 : vector<8x1xf32>
    %238 = math.rsqrt %237 : vector<8x1xf32>
    %239 = arith.mulf %223, %238 : vector<8x1xf32>
    %240 = arith.mulf %231, %239 : vector<8x1xf32>
    %241 = arith.subf %224, %240 : vector<8x1xf32>
    %242 = vector.broadcast %239 : vector<8x1xf32> to vector<8x512xf32>
    %243 = arith.mulf %222, %242 : vector<8x512xf32>
    %244 = vector.broadcast %241 : vector<8x1xf32> to vector<8x512xf32>
    %245 = arith.addf %243, %244 : vector<8x512xf32>
    %cst_99 = arith.constant 0.000000e+00 : f32
    %246 = vector.broadcast %cst_99 : f32 to vector<8x512xf32>
    %247 = arith.maximumf %245, %246 : vector<8x512xf32>
    %cst_100 = arith.constant 0.000000e+00 : f32
    %248 = vector.broadcast %cst_100 : f32 to vector<8x17xf32>
    %249 = vector.extract_strided_slice %247 {offsets = [0, 0], sizes = [8, 495], strides = [1, 1]} : vector<8x512xf32> to vector<8x495xf32>
    %250 = tpu.concatenate %248, %249 in 1 : vector<8x17xf32>, vector<8x495xf32> -> vector<8x512xf32>
    %251 = vector.broadcast %24 : vector<1x512xf32> to vector<8x512xf32>
    %252 = arith.mulf %250, %251 : vector<8x512xf32>
    %cst_101 = arith.constant 0.000000e+00 : f32
    %253 = vector.broadcast %cst_101 : f32 to vector<8x16xf32>
    %254 = vector.extract_strided_slice %247 {offsets = [0, 0], sizes = [8, 496], strides = [1, 1]} : vector<8x512xf32> to vector<8x496xf32>
    %255 = tpu.concatenate %253, %254 in 1 : vector<8x16xf32>, vector<8x496xf32> -> vector<8x512xf32>
    %256 = vector.broadcast %46 : vector<1x512xf32> to vector<8x512xf32>
    %257 = arith.mulf %255, %256 : vector<8x512xf32>
    %cst_102 = arith.constant 0.000000e+00 : f32
    %258 = vector.broadcast %cst_102 : f32 to vector<8x15xf32>
    %259 = vector.extract_strided_slice %247 {offsets = [0, 0], sizes = [8, 497], strides = [1, 1]} : vector<8x512xf32> to vector<8x497xf32>
    %260 = tpu.concatenate %258, %259 in 1 : vector<8x15xf32>, vector<8x497xf32> -> vector<8x512xf32>
    %261 = vector.broadcast %68 : vector<1x512xf32> to vector<8x512xf32>
    %262 = arith.mulf %260, %261 : vector<8x512xf32>
    %cst_103 = arith.constant 0.000000e+00 : f32
    %263 = vector.broadcast %cst_103 : f32 to vector<8x1xf32>
    %264 = vector.extract_strided_slice %247 {offsets = [0, 0], sizes = [8, 511], strides = [1, 1]} : vector<8x512xf32> to vector<8x511xf32>
    %265 = tpu.concatenate %263, %264 in 1 : vector<8x1xf32>, vector<8x511xf32> -> vector<8x512xf32>
    %266 = vector.broadcast %90 : vector<1x512xf32> to vector<8x512xf32>
    %267 = arith.mulf %265, %266 : vector<8x512xf32>
    %cst_104 = arith.constant 0.000000e+00 : f32
    %268 = vector.broadcast %cst_104 : f32 to vector<8x1xf32>
    %269 = vector.extract_strided_slice %247 {offsets = [0, 1], sizes = [8, 511], strides = [1, 1]} : vector<8x512xf32> to vector<8x511xf32>
    %270 = tpu.concatenate %269, %268 in 1 : vector<8x511xf32>, vector<8x1xf32> -> vector<8x512xf32>
    %271 = vector.broadcast %112 : vector<1x512xf32> to vector<8x512xf32>
    %272 = arith.mulf %270, %271 : vector<8x512xf32>
    %cst_105 = arith.constant 0.000000e+00 : f32
    %273 = vector.broadcast %cst_105 : f32 to vector<8x15xf32>
    %274 = vector.extract_strided_slice %247 {offsets = [0, 15], sizes = [8, 497], strides = [1, 1]} : vector<8x512xf32> to vector<8x497xf32>
    %275 = tpu.concatenate %274, %273 in 1 : vector<8x497xf32>, vector<8x15xf32> -> vector<8x512xf32>
    %276 = vector.broadcast %134 : vector<1x512xf32> to vector<8x512xf32>
    %277 = arith.mulf %275, %276 : vector<8x512xf32>
    %cst_106 = arith.constant 0.000000e+00 : f32
    %278 = vector.broadcast %cst_106 : f32 to vector<8x16xf32>
    %279 = vector.extract_strided_slice %247 {offsets = [0, 16], sizes = [8, 496], strides = [1, 1]} : vector<8x512xf32> to vector<8x496xf32>
    %280 = tpu.concatenate %279, %278 in 1 : vector<8x496xf32>, vector<8x16xf32> -> vector<8x512xf32>
    %281 = vector.broadcast %156 : vector<1x512xf32> to vector<8x512xf32>
    %282 = arith.mulf %280, %281 : vector<8x512xf32>
    %cst_107 = arith.constant 0.000000e+00 : f32
    %283 = vector.broadcast %cst_107 : f32 to vector<8x17xf32>
    %284 = vector.extract_strided_slice %247 {offsets = [0, 17], sizes = [8, 495], strides = [1, 1]} : vector<8x512xf32> to vector<8x495xf32>
    %285 = tpu.concatenate %284, %283 in 1 : vector<8x495xf32>, vector<8x17xf32> -> vector<8x512xf32>
    %286 = vector.broadcast %178 : vector<1x512xf32> to vector<8x512xf32>
    %287 = arith.mulf %285, %286 : vector<8x512xf32>
    %288 = tpu.concatenate %252, %257, %262, %267, %247, %272, %277, %282, %287 in 0 : vector<8x512xf32>, vector<8x512xf32>, vector<8x512xf32>, vector<8x512xf32>, vector<8x512xf32>, vector<8x512xf32>, vector<8x512xf32>, vector<8x512xf32>, vector<8x512xf32> -> vector<72x512xf32>
    %c0_108 = arith.constant 0 : index
    %c0_109 = arith.constant 0 : index
    %289 = vector.load %arg3[%c0_108, %c0_109] : memref<8x72xf32, #tpu.memory_space<vmem>>, vector<8x72xf32>
    %cst_110 = arith.constant dense<0.000000e+00> : vector<8x512xf32>
    %290 = tpu.matmul %289, %288, %cst_110 {dimension_numbers = #tpu.dot_dimension_numbers<[1], [0], [0], [1], [0, 0, 1, 1], [], []>} : vector<8x72xf32>, vector<72x512xf32>, vector<8x512xf32> -> vector<8x512xf32>
    %c0_111 = arith.constant 0 : index
    %c0_112 = arith.constant 0 : index
    %291 = vector.load %arg6[%c0_111, %c0_112] : memref<8x1xf32, #tpu.memory_space<vmem>>, vector<8x1xf32>
    %c0_113 = arith.constant 0 : index
    %c0_114 = arith.constant 0 : index
    %292 = vector.load %arg7[%c0_113, %c0_114] : memref<8x1xf32, #tpu.memory_space<vmem>>, vector<8x1xf32>
    %cst_115 = arith.constant dense<0.000000e+00> : vector<8xf32>
    %293 = vector.multi_reduction <add>, %290, %cst_115 [1] : vector<8x512xf32> to vector<8xf32>
    %294 = vector.shape_cast %293 : vector<8xf32> to vector<8x1xf32>
    %295 = arith.mulf %290, %290 : vector<8x512xf32>
    %cst_116 = arith.constant dense<0.000000e+00> : vector<8xf32>
    %296 = vector.multi_reduction <add>, %295, %cst_116 [1] : vector<8x512xf32> to vector<8xf32>
    %297 = vector.shape_cast %296 : vector<8xf32> to vector<8x1xf32>
    %cst_117 = arith.constant 0.001953125 : f32
    %298 = vector.broadcast %cst_117 : f32 to vector<8x1xf32>
    %299 = arith.mulf %294, %298 : vector<8x1xf32>
    %cst_118 = arith.constant 0.001953125 : f32
    %300 = vector.broadcast %cst_118 : f32 to vector<8x1xf32>
    %301 = arith.mulf %297, %300 : vector<8x1xf32>
    %302 = arith.mulf %299, %299 : vector<8x1xf32>
    %303 = arith.subf %301, %302 : vector<8x1xf32>
    %cst_119 = arith.constant 9.99999974E-6 : f32
    %304 = vector.broadcast %cst_119 : f32 to vector<8x1xf32>
    %305 = arith.addf %303, %304 : vector<8x1xf32>
    %306 = math.rsqrt %305 : vector<8x1xf32>
    %307 = arith.mulf %291, %306 : vector<8x1xf32>
    %308 = arith.mulf %299, %307 : vector<8x1xf32>
    %309 = arith.subf %292, %308 : vector<8x1xf32>
    %310 = vector.broadcast %307 : vector<8x1xf32> to vector<8x512xf32>
    %311 = arith.mulf %290, %310 : vector<8x512xf32>
    %312 = vector.broadcast %309 : vector<8x1xf32> to vector<8x512xf32>
    %313 = arith.addf %311, %312 : vector<8x512xf32>
    %314 = vector.extract_strided_slice %221 {offsets = [8, 0], sizes = [8, 512], strides = [1, 1]} : vector<16x512xf32> to vector<8x512xf32>
    %c0_120 = arith.constant 0 : index
    %c0_121 = arith.constant 0 : index
    %315 = vector.load %arg8[%c0_120, %c0_121] : memref<8x1xf32, #tpu.memory_space<vmem>>, vector<8x1xf32>
    %c0_122 = arith.constant 0 : index
    %c0_123 = arith.constant 0 : index
    %316 = vector.load %arg9[%c0_122, %c0_123] : memref<8x1xf32, #tpu.memory_space<vmem>>, vector<8x1xf32>
    %cst_124 = arith.constant dense<0.000000e+00> : vector<8xf32>
    %317 = vector.multi_reduction <add>, %314, %cst_124 [1] : vector<8x512xf32> to vector<8xf32>
    %318 = vector.shape_cast %317 : vector<8xf32> to vector<8x1xf32>
    %319 = arith.mulf %314, %314 : vector<8x512xf32>
    %cst_125 = arith.constant dense<0.000000e+00> : vector<8xf32>
    %320 = vector.multi_reduction <add>, %319, %cst_125 [1] : vector<8x512xf32> to vector<8xf32>
    %321 = vector.shape_cast %320 : vector<8xf32> to vector<8x1xf32>
    %cst_126 = arith.constant 0.001953125 : f32
    %322 = vector.broadcast %cst_126 : f32 to vector<8x1xf32>
    %323 = arith.mulf %318, %322 : vector<8x1xf32>
    %cst_127 = arith.constant 0.001953125 : f32
    %324 = vector.broadcast %cst_127 : f32 to vector<8x1xf32>
    %325 = arith.mulf %321, %324 : vector<8x1xf32>
    %326 = arith.mulf %323, %323 : vector<8x1xf32>
    %327 = arith.subf %325, %326 : vector<8x1xf32>
    %cst_128 = arith.constant 9.99999974E-6 : f32
    %328 = vector.broadcast %cst_128 : f32 to vector<8x1xf32>
    %329 = arith.addf %327, %328 : vector<8x1xf32>
    %330 = math.rsqrt %329 : vector<8x1xf32>
    %331 = arith.mulf %315, %330 : vector<8x1xf32>
    %332 = arith.mulf %323, %331 : vector<8x1xf32>
    %333 = arith.subf %316, %332 : vector<8x1xf32>
    %334 = vector.broadcast %331 : vector<8x1xf32> to vector<8x512xf32>
    %335 = arith.mulf %314, %334 : vector<8x512xf32>
    %336 = vector.broadcast %333 : vector<8x1xf32> to vector<8x512xf32>
    %337 = arith.addf %335, %336 : vector<8x512xf32>
    %338 = arith.addf %313, %337 : vector<8x512xf32>
    %c0_129 = arith.constant 0 : index
    %c0_130 = arith.constant 0 : index
    %339 = vector.load %arg11[%c0_129, %c0_130] : memref<8x512xf32, #tpu.memory_space<vmem>>, vector<8x512xf32>
    tpu.vector_store %arg11[%c0_129, %c0_130], %338 {strides = array<i32>} : memref<8x512xf32, #tpu.memory_space<vmem>>, vector<8x512xf32>,
    %cst_131 = arith.constant 0.000000e+00 : f32
    %340 = vector.broadcast %cst_131 : f32 to vector<8x512xf32>
    %341 = arith.maximumf %338, %340 : vector<8x512xf32>
    %c0_132 = arith.constant 0 : index
    %c0_133 = arith.constant 0 : index
    %342 = vector.load %arg10[%c0_132, %c0_133] : memref<8x512xf32, #tpu.memory_space<vmem>>, vector<8x512xf32>
    tpu.vector_store %arg10[%c0_132, %c0_133], %341 {strides = array<i32>} : memref<8x512xf32, #tpu.memory_space<vmem>>, vector<8x512xf32>,
    return
  }
}

</mosaic_0001>

<llo_original>
// kernel: tpu_custom_call.1
$region0: #{tpu_custom_call.1}
  #allocation0 [shape = 'u32[]', space=smem, size = 0x4, offset = 0x4, fixed_abs, tag = 'smem constant byte address 0x4 - core index']
  #allocation1 [shape = 'u32[144,128]{1,0:T(1,128)}', space=vmem, size = 0x12000, scoped, tag = 'internal scratch']
  %s0 = inlined_call_operand.vmem [shape: f32[4,512], index: 0, kind: input, shape index: {}]
  %s1 = inlined_call_operand.vmem [shape: s32[2,512], index: 1, kind: input, shape index: {}]
  %s2 = inlined_call_operand.vmem [shape: f32[16,36], index: 2, kind: input, shape index: {}]
  %s3 = inlined_call_operand.vmem [shape: f32[8,72], index: 3, kind: input, shape index: {}]
  %s4 = inlined_call_operand.vmem [shape: f32[8,1], index: 4, kind: input, shape index: {}]
  %s5 = inlined_call_operand.vmem [shape: f32[8,1], index: 5, kind: input, shape index: {}]
  %s6 = inlined_call_operand.vmem [shape: f32[8,1], index: 6, kind: input, shape index: {}]
  %s7 = inlined_call_operand.vmem [shape: f32[8,1], index: 7, kind: input, shape index: {}]
  %s8 = inlined_call_operand.vmem [shape: f32[8,1], index: 8, kind: input, shape index: {}]
  %s9 = inlined_call_operand.vmem [shape: f32[8,1], index: 9, kind: input, shape index: {}]
  %s10 = inlined_call_operand.hbm [shape: f32[8,512], index: 10, kind: output, shape index: {0}]
  %s11 = inlined_call_operand.hbm [shape: f32[8,512], index: 11, kind: output, shape index: {1}]
  %12 = xla_tuple %s10, %s11
  %s13 = sld [smem:[#allocation0]]
  $region58: #{tpu_custom_call.1} parent=0
    _
  %s15 = ssub.s32 1, %s13
  %s16 = scalar_select 0, %s15, %s13
  $region1: #{tpu_custom_call.1} parent=0
    #allocation2 [shape = 'u8[16384]{0}', space=vmem, size = 0x4000, scoped, tag = 'output window, operand 0, single buffered']
    #allocation3 [shape = 's32[1]{0}', space=sflag, size = 0x4, scoped, tag = 'scoped memory for tpu_custom_call.1']
    #allocation4 [shape = 'u8[16384]{0}', space=vmem, size = 0x4000, scoped, tag = 'output window, operand 1, single buffered']
    #allocation5 [shape = 's32[1]{0}', space=sflag, size = 0x4, scoped, tag = 'scoped memory for tpu_custom_call.1']
    %17 = vsyncpa [#allocation3], 0
    %18 = vsyncpa [#allocation5], 0
    // Predicated region
    $region2: #{tpu_custom_call.1} parent=1 // pred_check
      _
    $region3: #{tpu_custom_call.1} parent=1 // pred_check_branch
      %20 = sbr.rel (0) target = $region5
    $region4: #{tpu_custom_call.1} parent=1 // pred_region
      _
    $region5: #{tpu_custom_call.1} parent=1 // pred_fallthru
      _
    // Predicated region
    $region6: #{tpu_custom_call.1} parent=1 // pred_check
      _
    $region7: #{tpu_custom_call.1} parent=1 // pred_check_branch
      %22 = sbr.rel (0) target = $region9
    $region8: #{tpu_custom_call.1} parent=1 // pred_region
      _
    $region9: #{tpu_custom_call.1} parent=1 // pred_fallthru
      _
    // Predicated region
    $region10: #{tpu_custom_call.1} parent=1 // pred_check
      _
    $region11: #{tpu_custom_call.1} parent=1 // pred_check_branch
      %24 = sbr.rel (0) target = $region13
    $region12: #{tpu_custom_call.1} parent=1 // pred_region
      _
    $region13: #{tpu_custom_call.1} parent=1 // pred_fallthru
      _
    // Predicated region
    $region14: #{tpu_custom_call.1} parent=1 // pred_check
      _
    $region15: #{tpu_custom_call.1} parent=1 // pred_check_branch
      %26 = sbr.rel (0) target = $region17
    $region16: #{tpu_custom_call.1} parent=1 // pred_region
      _
    $region17: #{tpu_custom_call.1} parent=1 // pred_fallthru
      _
    // Predicated region
    $region18: #{tpu_custom_call.1} parent=1 // pred_check
      _
    $region19: #{tpu_custom_call.1} parent=1 // pred_check_branch
      %28 = sbr.rel (0) target = $region21
    $region20: #{tpu_custom_call.1} parent=1 // pred_region
      _
    $region21: #{tpu_custom_call.1} parent=1 // pred_fallthru
      _
    // Predicated region
    $region22: #{tpu_custom_call.1} parent=1 // pred_check
      _
    $region23: #{tpu_custom_call.1} parent=1 // pred_check_branch
      %30 = sbr.rel (0) target = $region25
    $region24: #{tpu_custom_call.1} parent=1 // pred_region
      _
    $region25: #{tpu_custom_call.1} parent=1 // pred_fallthru
      _
    // Predicated region
    $region26: #{tpu_custom_call.1} parent=1 // pred_check
      _
    $region27: #{tpu_custom_call.1} parent=1 // pred_check_branch
      %32 = sbr.rel (0) target = $region29
    $region28: #{tpu_custom_call.1} parent=1 // pred_region
      _
    $region29: #{tpu_custom_call.1} parent=1 // pred_fallthru
      _
    // Predicated region
    $region30: #{tpu_custom_call.1} parent=1 // pred_check
      _
    $region31: #{tpu_custom_call.1} parent=1 // pred_check_branch
      %34 = sbr.rel (0) target = $region33
    $region32: #{tpu_custom_call.1} parent=1 // pred_region
      _
    $region33: #{tpu_custom_call.1} parent=1 // pred_fallthru
      _
    // Predicated region
    $region34: #{tpu_custom_call.1} parent=1 // pred_check
      _
    $region35: #{tpu_custom_call.1} parent=1 // pred_check_branch
      %36 = sbr.rel (0) target = $region37
    $region36: #{tpu_custom_call.1} parent=1 // pred_region
      _
    $region37: #{tpu_custom_call.1} parent=1 // pred_fallthru
      _
    // Predicated region
    $region38: #{tpu_custom_call.1} parent=1 // pred_check
      _
    $region39: #{tpu_custom_call.1} parent=1 // pred_check_branch
      %38 = sbr.rel (0) target = $region41
    $region40: #{tpu_custom_call.1} parent=1 // pred_region
      _
    $region41: #{tpu_custom_call.1} parent=1 // pred_fallthru
      _
    %v39 = vld [vmem:[%s0] sm:$0xff]
    %v40 = vld [vmem:[%s0 + $0x8] sm:$0xff]
    %v41 = vld [vmem:[%s1] ss:$2 sm:$0xf]
    %s42 = scalar_lea.vmem %s1, 1
    %v43 = vld [vmem:[%s42] ss:$2 sm:$0xf]
    %v44 = vadd.s32 %v41, 4294967295
    %vm45 = vcmp.ge.s32.totalorder %v44, 0
    %vm46 = vcmp.lt.s32.totalorder %v44, 16
    %vm47 = vmand %vm45, %vm46
    %v48 = vadd.s32 %v43, 4294967295
    %vm49 = vcmp.ge.s32.totalorder %v48, 0
    %vm50 = vmand %vm47, %vm49
    %vm51 = vcmp.lt.s32.totalorder %v48, 16
    %vm52 = vmand %vm50, %vm51
    %v53 = vsel %vm52, 1.0, 0.0
    %vm54 = vcmp.ge.s32.totalorder %v43, 0
    %vm55 = vmand %vm47, %vm54
    %vm56 = vcmp.lt.s32.totalorder %v43, 16
    %vm57 = vmand %vm55, %vm56
    %v58 = vsel %vm57, 1.0, 0.0
    %v59 = vadd.s32 %v43, 1
    %vm60 = vcmp.ge.s32.totalorder %v59, 0
    %vm61 = vmand %vm47, %vm60
    %vm62 = vcmp.lt.s32.totalorder %v59, 16
    %vm63 = vmand %vm61, %vm62
    %v64 = vsel %vm63, 1.0, 0.0
    %vm65 = vcmp.ge.s32.totalorder %v41, 0
    %vm66 = vcmp.lt.s32.totalorder %v41, 16
    %vm67 = vmand %vm65, %vm66
    %vm68 = vmand %vm67, %vm49
    %vm69 = vmand %vm68, %vm51
    %v70 = vsel %vm69, 1.0, 0.0
    %vm71 = vmand %vm67, %vm60
    %vm72 = vmand %vm71, %vm62
    %v73 = vsel %vm72, 1.0, 0.0
    %v74 = vadd.s32 %v41, 1
    %vm75 = vcmp.ge.s32.totalorder %v74, 0
    %vm76 = vcmp.lt.s32.totalorder %v74, 16
    %vm77 = vmand %vm75, %vm76
    %vm78 = vmand %vm77, %vm49
    %vm79 = vmand %vm78, %vm51
    %v80 = vsel %vm79, 1.0, 0.0
    %vm81 = vmand %vm77, %vm54
    %vm82 = vmand %vm81, %vm56
    %v83 = vsel %vm82, 1.0, 0.0
    %vm84 = vmand %vm77, %vm60
    %vm85 = vmand %vm84, %vm62
    %v86 = vsel %vm85, 1.0, 0.0
    %v89 = vcombine.high %v39, %v39
    %v90 = vcombine.high %v40, %v40
    %91 = vrot.lane.b32.xlu0 %v39, 17
    %v92 = vpop.permute.xlu0 %91
    %93 = vrot.lane.b32.xlu0 %v89, 17
    %v94 = vpop.permute.xlu0 %93
    %95 = vrot.lane.b32.xlu0 %v40, 17
    %v96 = vpop.permute.xlu0 %95
    %97 = vrot.lane.b32.xlu0 %v90, 17
    %v98 = vpop.permute.xlu0 %97
    %vm99 = vcmask 138240
    %v100 = vsel %vm99, %v92, %v94
    %v101 = vsel %vm99, %v94, %v96
    %v102 = vsel %vm99, %v96, %v98
    %v107 = vsel %vm99, 0.0, %v92
    %v109 = vlaneseq
    %v110 = vshrl.u32 %v109, 7
    %v111 = vsub.s32 0, %v110
    %v112 = vrot.slane %v53, %v111
    %v113 = vlaneseq
    %v114 = vshrl.u32 %v113, 7
    %v115 = vsub.s32 1, %v114
    %v116 = vrot.slane %v53, %v115
    %v117 = vlaneseq
    %v118 = vshrl.u32 %v117, 7
    %v119 = vsub.s32 2, %v118
    %v120 = vrot.slane %v53, %v119
    %v121 = vlaneseq
    %v122 = vshrl.u32 %v121, 7
    %v123 = vsub.s32 3, %v122
    %v124 = vrot.slane %v53, %v123
    %v129 = vmul.f32 %v107, %v112
    %v130 = vmul.f32 %v100, %v116
    %v131 = vmul.f32 %v101, %v120
    %v132 = vmul.f32 %v102, %v124
    %133 = vrot.lane.b32.xlu0 %v39, 16
    %v134 = vpop.permute.xlu0 %133
    %135 = vrot.lane.b32.xlu0 %v89, 16
    %v136 = vpop.permute.xlu0 %135
    %137 = vrot.lane.b32.xlu0 %v40, 16
    %v138 = vpop.permute.xlu0 %137
    %139 = vrot.lane.b32.xlu0 %v90, 16
    %v140 = vpop.permute.xlu0 %139
    %vm141 = vcmask 130048
    %v142 = vsel %vm141, %v134, %v136
    %v143 = vsel %vm141, %v136, %v138
    %v144 = vsel %vm141, %v138, %v140
    %v149 = vsel %vm141, 0.0, %v134
    %v151 = vlaneseq
    %v152 = vshrl.u32 %v151, 7
    %v153 = vsub.s32 0, %v152
    %v154 = vrot.slane %v58, %v153
    %v155 = vlaneseq
    %v156 = vshrl.u32 %v155, 7
    %v157 = vsub.s32 1, %v156
    %v158 = vrot.slane %v58, %v157
    %v159 = vlaneseq
    %v160 = vshrl.u32 %v159, 7
    %v161 = vsub.s32 2, %v160
    %v162 = vrot.slane %v58, %v161
    %v163 = vlaneseq
    %v164 = vshrl.u32 %v163, 7
    %v165 = vsub.s32 3, %v164
    %v166 = vrot.slane %v58, %v165
    %v171 = vmul.f32 %v149, %v154
    %v172 = vmul.f32 %v142, %v158
    %v173 = vmul.f32 %v143, %v162
    %v174 = vmul.f32 %v144, %v166
    %175 = vrot.lane.b32.xlu0 %v39, 15
    %v176 = vpop.permute.xlu0 %175
    %177 = vrot.lane.b32.xlu0 %v89, 15
    %v178 = vpop.permute.xlu0 %177
    %179 = vrot.lane.b32.xlu0 %v40, 15
    %v180 = vpop.permute.xlu0 %179
    %181 = vrot.lane.b32.xlu0 %v90, 15
    %v182 = vpop.permute.xlu0 %181
    %vm183 = vcmask 121856
    %v184 = vsel %vm183, %v176, %v178
    %v185 = vsel %vm183, %v178, %v180
    %v186 = vsel %vm183, %v180, %v182
    %v191 = vsel %vm183, 0.0, %v176
    %v193 = vlaneseq
    %v194 = vshrl.u32 %v193, 7
    %v195 = vsub.s32 0, %v194
    %v196 = vrot.slane %v64, %v195
    %v197 = vlaneseq
    %v198 = vshrl.u32 %v197, 7
    %v199 = vsub.s32 1, %v198
    %v200 = vrot.slane %v64, %v199
    %v201 = vlaneseq
    %v202 = vshrl.u32 %v201, 7
    %v203 = vsub.s32 2, %v202
    %v204 = vrot.slane %v64, %v203
    %v205 = vlaneseq
    %v206 = vshrl.u32 %v205, 7
    %v207 = vsub.s32 3, %v206
    %v208 = vrot.slane %v64, %v207
    %v213 = vmul.f32 %v191, %v196
    %v214 = vmul.f32 %v184, %v200
    %v215 = vmul.f32 %v185, %v204
    %v216 = vmul.f32 %v186, %v208
    %217 = vrot.lane.b32.xlu0 %v39, 1
    %v218 = vpop.permute.xlu0 %217
    %219 = vrot.lane.b32.xlu0 %v89, 1
    %v220 = vpop.permute.xlu0 %219
    %221 = vrot.lane.b32.xlu0 %v40, 1
    %v222 = vpop.permute.xlu0 %221
    %223 = vrot.lane.b32.xlu0 %v90, 1
    %v224 = vpop.permute.xlu0 %223
    %vm225 = vcmask 7168
    %v226 = vsel %vm225, %v218, %v220
    %v227 = vsel %vm225, %v220, %v222
    %v228 = vsel %vm225, %v222, %v224
    %v233 = vsel %vm225, 0.0, %v218
    %v235 = vlaneseq
    %v236 = vshrl.u32 %v235, 7
    %v237 = vsub.s32 0, %v236
    %v238 = vrot.slane %v70, %v237
    %v239 = vlaneseq
    %v240 = vshrl.u32 %v239, 7
    %v241 = vsub.s32 1, %v240
    %v242 = vrot.slane %v70, %v241
    %v243 = vlaneseq
    %v244 = vshrl.u32 %v243, 7
    %v245 = vsub.s32 2, %v244
    %v246 = vrot.slane %v70, %v245
    %v247 = vlaneseq
    %v248 = vshrl.u32 %v247, 7
    %v249 = vsub.s32 3, %v248
    %v250 = vrot.slane %v70, %v249
    %v255 = vmul.f32 %v233, %v238
    %v256 = vmul.f32 %v226, %v242
    %v257 = vmul.f32 %v227, %v246
    %v258 = vmul.f32 %v228, %v250
    %259 = vrot.lane.b32.xlu0 %v39, 127
    %v260 = vpop.permute.xlu0 %259
    %261 = vrot.lane.b32.xlu0 %v89, 127
    %v262 = vpop.permute.xlu0 %261
    %263 = vrot.lane.b32.xlu0 %v40, 127
    %v264 = vpop.permute.xlu0 %263
    %265 = vrot.lane.b32.xlu0 %v90, 127
    %v266 = vpop.permute.xlu0 %265
    %vm267 = vcmask 1039360
    %v268 = vsel %vm267, %v260, %v262
    %v269 = vsel %vm267, %v262, %v264
    %v270 = vsel %vm267, %v264, %v266
    %v275 = vsel %vm267, %v266, 0.0
    %v277 = vlaneseq
    %v278 = vshrl.u32 %v277, 7
    %v279 = vsub.s32 0, %v278
    %v280 = vrot.slane %v73, %v279
    %v281 = vlaneseq
    %v282 = vshrl.u32 %v281, 7
    %v283 = vsub.s32 1, %v282
    %v284 = vrot.slane %v73, %v283
    %v285 = vlaneseq
    %v286 = vshrl.u32 %v285, 7
    %v287 = vsub.s32 2, %v286
    %v288 = vrot.slane %v73, %v287
    %v289 = vlaneseq
    %v290 = vshrl.u32 %v289, 7
    %v291 = vsub.s32 3, %v290
    %v292 = vrot.slane %v73, %v291
    %v297 = vmul.f32 %v268, %v280
    %v298 = vmul.f32 %v269, %v284
    %v299 = vmul.f32 %v270, %v288
    %v300 = vmul.f32 %v275, %v292
    %301 = vrot.lane.b32.xlu0 %v39, 113
    %v302 = vpop.permute.xlu0 %301
    %303 = vrot.lane.b32.xlu0 %v89, 113
    %v304 = vpop.permute.xlu0 %303
    %305 = vrot.lane.b32.xlu0 %v40, 113
    %v306 = vpop.permute.xlu0 %305
    %307 = vrot.lane.b32.xlu0 %v90, 113
    %v308 = vpop.permute.xlu0 %307
    %vm309 = vcmask 924672
    %v310 = vsel %vm309, %v302, %v304
    %v311 = vsel %vm309, %v304, %v306
    %v312 = vsel %vm309, %v306, %v308
    %v317 = vsel %vm309, %v308, 0.0
    %v319 = vlaneseq
    %v320 = vshrl.u32 %v319, 7
    %v321 = vsub.s32 0, %v320
    %v322 = vrot.slane %v80, %v321
    %v323 = vlaneseq
    %v324 = vshrl.u32 %v323, 7
    %v325 = vsub.s32 1, %v324
    %v326 = vrot.slane %v80, %v325
    %v327 = vlaneseq
    %v328 = vshrl.u32 %v327, 7
    %v329 = vsub.s32 2, %v328
    %v330 = vrot.slane %v80, %v329
    %v331 = vlaneseq
    %v332 = vshrl.u32 %v331, 7
    %v333 = vsub.s32 3, %v332
    %v334 = vrot.slane %v80, %v333
    %v339 = vmul.f32 %v310, %v322
    %v340 = vmul.f32 %v311, %v326
    %v341 = vmul.f32 %v312, %v330
    %v342 = vmul.f32 %v317, %v334
    %343 = vrot.lane.b32.xlu0 %v39, 112
    %v344 = vpop.permute.xlu0 %343
    %345 = vrot.lane.b32.xlu0 %v89, 112
    %v346 = vpop.permute.xlu0 %345
    %347 = vrot.lane.b32.xlu0 %v40, 112
    %v348 = vpop.permute.xlu0 %347
    %349 = vrot.lane.b32.xlu0 %v90, 112
    %v350 = vpop.permute.xlu0 %349
    %vm351 = vcmask 916480
    %v352 = vsel %vm351, %v344, %v346
    %v353 = vsel %vm351, %v346, %v348
    %v354 = vsel %vm351, %v348, %v350
    %v359 = vsel %vm351, %v350, 0.0
    %v361 = vlaneseq
    %v362 = vshrl.u32 %v361, 7
    %v363 = vsub.s32 0, %v362
    %v364 = vrot.slane %v83, %v363
    %v365 = vlaneseq
    %v366 = vshrl.u32 %v365, 7
    %v367 = vsub.s32 1, %v366
    %v368 = vrot.slane %v83, %v367
    %v369 = vlaneseq
    %v370 = vshrl.u32 %v369, 7
    %v371 = vsub.s32 2, %v370
    %v372 = vrot.slane %v83, %v371
    %v373 = vlaneseq
    %v374 = vshrl.u32 %v373, 7
    %v375 = vsub.s32 3, %v374
    %v376 = vrot.slane %v83, %v375
    %v381 = vmul.f32 %v352, %v364
    %v382 = vmul.f32 %v353, %v368
    %v383 = vmul.f32 %v354, %v372
    %v384 = vmul.f32 %v359, %v376
    %385 = vrot.lane.b32.xlu0 %v39, 111
    %v386 = vpop.permute.xlu0 %385
    %387 = vrot.lane.b32.xlu0 %v89, 111
    %v388 = vpop.permute.xlu0 %387
    %389 = vrot.lane.b32.xlu0 %v40, 111
    %v390 = vpop.permute.xlu0 %389
    %391 = vrot.lane.b32.xlu0 %v90, 111
    %v392 = vpop.permute.xlu0 %391
    %vm393 = vcmask 908288
    %v394 = vsel %vm393, %v386, %v388
    %v395 = vsel %vm393, %v388, %v390
    %v396 = vsel %vm393, %v390, %v392
    %v401 = vsel %vm393, %v392, 0.0
    %v403 = vlaneseq
    %v404 = vshrl.u32 %v403, 7
    %v405 = vsub.s32 0, %v404
    %v406 = vrot.slane %v86, %v405
    %v407 = vlaneseq
    %v408 = vshrl.u32 %v407, 7
    %v409 = vsub.s32 1, %v408
    %v410 = vrot.slane %v86, %v409
    %v411 = vlaneseq
    %v412 = vshrl.u32 %v411, 7
    %v413 = vsub.s32 2, %v412
    %v414 = vrot.slane %v86, %v413
    %v415 = vlaneseq
    %v416 = vshrl.u32 %v415, 7
    %v417 = vsub.s32 3, %v416
    %v418 = vrot.slane %v86, %v417
    %v423 = vmul.f32 %v394, %v406
    %v424 = vmul.f32 %v395, %v410
    %v425 = vmul.f32 %v396, %v414
    %v426 = vmul.f32 %v401, %v418
    %v431 = vrot.slane %v171, 4
    %v432 = vrot.slane %v172, 4
    %v433 = vrot.slane %v173, 4
    %v434 = vrot.slane %v174, 4
    %v443 = vrot.slane %v255, 4
    %v444 = vrot.slane %v256, 4
    %v445 = vrot.slane %v257, 4
    %v446 = vrot.slane %v258, 4
    %v457 = vrot.slane %v297, 4
    %v458 = vrot.slane %v298, 4
    %v459 = vrot.slane %v299, 4
    %v460 = vrot.slane %v300, 4
    %v469 = vrot.slane %v381, 4
    %v470 = vrot.slane %v382, 4
    %v471 = vrot.slane %v383, 4
    %v472 = vrot.slane %v384, 4
    %vm477 = vcmask 1043456
    %v478 = vsel %vm477, %v129, %v431
    %v479 = vsel %vm477, %v130, %v432
    %v480 = vsel %vm477, %v131, %v433
    %v481 = vsel %vm477, %v132, %v434
    %v482 = vsel %vm477, %v213, %v443
    %v483 = vsel %vm477, %v214, %v444
    %v484 = vsel %vm477, %v215, %v445
    %v485 = vsel %vm477, %v216, %v446
    %v486 = vsel %vm477, %v39, %v457
    %v487 = vsel %vm477, %v89, %v458
    %v488 = vsel %vm477, %v40, %v459
    %v489 = vsel %vm477, %v90, %v460
    %v490 = vsel %vm477, %v339, %v469
    %v491 = vsel %vm477, %v340, %v470
    %v492 = vsel %vm477, %v341, %v471
    %v493 = vsel %vm477, %v342, %v472
    %v494 = vld [vmem:[%s2] sm:$0xff]
    %v495 = vld [vmem:[%s2 + $0x8] sm:$0xff]
    %vm496 = vcmask 293888
    %v498 = vsel %vm496, %v494, 0
    %v501 = vsel %vm496, %v495, 0
    %v504 = vsel %vm477, %v423, 0
    %v507 = vsel %vm477, %v424, 0
    %v510 = vsel %vm477, %v425, 0
    %v513 = vsel %vm477, %v426, 0
    %515 = vmatprep.subr.mxu0 0.0
    %516 = vmatpush1.msra.mxu0 0.0
    %517 = vmatprep.subr.mxu0 0.0
    %518 = vmatpush1.msra.mxu0 0.0
    %519 = vmatprep.subr.mxu0 0.0
    %520 = vmatpush1.msra.mxu0 0.0
    %521 = vmatprep.subr.mxu0 0.0
    %522 = vmatpush1.msra.mxu0 0.0
    %523 = vmatprep.subr.mxu0 0.0
    %524 = vmatpush1.msra.mxu0 0.0
    %525 = vmatprep.subr.mxu0 0.0
    %526 = vmatpush1.msra.mxu0 0.0
    %527 = vmatprep.subr.mxu0 0.0
    %528 = vmatpush1.msra.mxu0 0.0
    %529 = vmatprep.subr.mxu0 0.0
    %530 = vmatpush1.msra.mxu0 0.0
    %531 = vmatprep.subr.mxu0 0.0
    %532 = vmatpush1.msra.mxu0 0.0
    %533 = vmatprep.subr.mxu0 0.0
    %534 = vmatpush1.msra.mxu0 0.0
    %535 = vmatprep.subr.mxu0 0.0
    %536 = vmatpush1.msra.mxu0 0.0
    %537 = vmatprep.subr.mxu0 %v507
    %538 = vmatpush1.msra.mxu0 %v504
    %539 = vmatprep.subr.mxu0 %v491
    %540 = vmatpush1.msra.mxu0 %v490
    %541 = vmatprep.subr.mxu0 %v487
    %542 = vmatpush1.msra.mxu0 %v486
    %543 = vmatprep.subr.mxu0 %v483
    %544 = vmatpush1.msra.mxu0 %v482
    %545 = vmatprep.subr.mxu0 %v479
    %546 = vmatpush1.msra.mxu0 %v478
    %547 = vmatprep.subr.mxu0 0.0
    %548 = vmatpush2.msra.mxu0 0.0
    %549 = vmatprep.subr.mxu0 0.0
    %550 = vmatpush2.msra.mxu0 0.0
    %551 = vmatprep.subr.mxu0 0.0
    %552 = vmatpush2.msra.mxu0 0.0
    %553 = vmatprep.subr.mxu0 0.0
    %554 = vmatpush2.msra.mxu0 0.0
    %555 = vmatprep.subr.mxu0 0.0
    %556 = vmatpush2.msra.mxu0 0.0
    %557 = vmatprep.subr.mxu0 0.0
    %558 = vmatpush2.msra.mxu0 0.0
    %559 = vmatprep.subr.mxu0 0.0
    %560 = vmatpush2.msra.mxu0 0.0
    %561 = vmatprep.subr.mxu0 0.0
    %562 = vmatpush2.msra.mxu0 0.0
    %563 = vmatprep.subr.mxu0 0.0
    %564 = vmatpush2.msra.mxu0 0.0
    %565 = vmatprep.subr.mxu0 0.0
    %566 = vmatpush2.msra.mxu0 0.0
    %567 = vmatprep.subr.mxu0 0.0
    %568 = vmatpush2.msra.mxu0 0.0
    %569 = vmatprep.subr.mxu0 0.0
    %570 = vmatpush2.msra.mxu0 0.0
    %571 = vmatprep.subr.mxu0 0.0
    %572 = vmatpush2.msra.mxu0 0.0
    %573 = vmatprep.subr.mxu0 0.0
    %574 = vmatpush2.msra.mxu0 0.0
    %575 = vmatprep.subr.mxu0 0.0
    %576 = vmatpush2.msra.mxu0 0.0
    %577 = vmatprep.subr.mxu0 0.0
    %578 = vmatpush2.msra.mxu0 0.0
    %579 = vmatprep.mubr.f32.mxu0 0.0
    %580 = vmatmul.mubr.f32.gmra.mxu0 %v498
    %v581 = vpop.f32.mrf.mxu0
    %v582 = vadd.f32 0.0, %v581
    %v583 = vpop.f32.mrf.mxu0
    %v584 = vadd.f32 0.0, %v583
    %585 = vmatprep.mubr.f32.mxu0 0.0
    %586 = vmatmul.mubr.f32.gmra.mxu0 %v501
    %v587 = vpop.f32.mrf.mxu0
    %v588 = vadd.f32 0.0, %v587
    %v589 = vpop.f32.mrf.mxu0
    %v590 = vadd.f32 0.0, %v589
    %591 = vdwg.mxu0
    %592 = vmatprep.subr.mxu0 0.0
    %593 = vmatpush1.msra.mxu0 0.0
    %594 = vmatprep.subr.mxu0 0.0
    %595 = vmatpush1.msra.mxu0 0.0
    %596 = vmatprep.subr.mxu0 0.0
    %597 = vmatpush1.msra.mxu0 0.0
    %598 = vmatprep.subr.mxu0 0.0
    %599 = vmatpush1.msra.mxu0 0.0
    %600 = vmatprep.subr.mxu0 0.0
    %601 = vmatpush1.msra.mxu0 0.0
    %602 = vmatprep.subr.mxu0 0.0
    %603 = vmatpush1.msra.mxu0 0.0
    %604 = vmatprep.subr.mxu0 0.0
    %605 = vmatpush1.msra.mxu0 0.0
    %606 = vmatprep.subr.mxu0 0.0
    %607 = vmatpush1.msra.mxu0 0.0
    %608 = vmatprep.subr.mxu0 0.0
    %609 = vmatpush1.msra.mxu0 0.0
    %610 = vmatprep.subr.mxu0 0.0
    %611 = vmatpush1.msra.mxu0 0.0
    %612 = vmatprep.subr.mxu0 0.0
    %613 = vmatpush1.msra.mxu0 0.0
    %614 = vmatprep.subr.mxu0 %v513
    %615 = vmatpush1.msra.mxu0 %v510
    %616 = vmatprep.subr.mxu0 %v493
    %617 = vmatpush1.msra.mxu0 %v492
    %618 = vmatprep.subr.mxu0 %v489
    %619 = vmatpush1.msra.mxu0 %v488
    %620 = vmatprep.subr.mxu0 %v485
    %621 = vmatpush1.msra.mxu0 %v484
    %622 = vmatprep.subr.mxu0 %v481
    %623 = vmatpush1.msra.mxu0 %v480
    %624 = vmatprep.subr.mxu0 0.0
    %625 = vmatpush2.msra.mxu0 0.0
    %626 = vmatprep.subr.mxu0 0.0
    %627 = vmatpush2.msra.mxu0 0.0
    %628 = vmatprep.subr.mxu0 0.0
    %629 = vmatpush2.msra.mxu0 0.0
    %630 = vmatprep.subr.mxu0 0.0
    %631 = vmatpush2.msra.mxu0 0.0
    %632 = vmatprep.subr.mxu0 0.0
    %633 = vmatpush2.msra.mxu0 0.0
    %634 = vmatprep.subr.mxu0 0.0
    %635 = vmatpush2.msra.mxu0 0.0
    %636 = vmatprep.subr.mxu0 0.0
    %637 = vmatpush2.msra.mxu0 0.0
    %638 = vmatprep.subr.mxu0 0.0
    %639 = vmatpush2.msra.mxu0 0.0
    %640 = vmatprep.subr.mxu0 0.0
    %641 = vmatpush2.msra.mxu0 0.0
    %642 = vmatprep.subr.mxu0 0.0
    %643 = vmatpush2.msra.mxu0 0.0
    %644 = vmatprep.subr.mxu0 0.0
    %645 = vmatpush2.msra.mxu0 0.0
    %646 = vmatprep.subr.mxu0 0.0
    %647 = vmatpush2.msra.mxu0 0.0
    %648 = vmatprep.subr.mxu0 0.0
    %649 = vmatpush2.msra.mxu0 0.0
    %650 = vmatprep.subr.mxu0 0.0
    %651 = vmatpush2.msra.mxu0 0.0
    %652 = vmatprep.subr.mxu0 0.0
    %653 = vmatpush2.msra.mxu0 0.0
    %654 = vmatprep.subr.mxu0 0.0
    %655 = vmatpush2.msra.mxu0 0.0
    %656 = vmatprep.mubr.f32.mxu0 0.0
    %657 = vmatmul.mubr.f32.gmra.mxu0 %v498
    %v658 = vpop.f32.mrf.mxu0
    %v659 = vadd.f32 0.0, %v658
    %v660 = vpop.f32.mrf.mxu0
    %v661 = vadd.f32 0.0, %v660
    %662 = vmatprep.mubr.f32.mxu0 0.0
    %663 = vmatmul.mubr.f32.gmra.mxu0 %v501
    %v664 = vpop.f32.mrf.mxu0
    %v665 = vadd.f32 0.0, %v664
    %v666 = vpop.f32.mrf.mxu0
    %v667 = vadd.f32 0.0, %v666
    %668 = vdwg.mxu0
    %v669 = vld [vmem:[%s4] sm:$0xff]
    %v670 = vld [vmem:[%s5] sm:$0xff]
    %v671 = vadd.f32 %v582, %v584
    %v672 = vadd.f32 %v671, %v659
    %v673 = vadd.f32 %v672, %v661
    %674 = vadd.xlane.f32.xlu0 %v673
    %v675 = vpop.xlane.xlu0 %674
    %v676 = vmul.f32 %v582, %v582
    %v677 = vmul.f32 %v584, %v584
    %v678 = vmul.f32 %v659, %v659
    %v679 = vmul.f32 %v661, %v661
    %v680 = vadd.f32 %v676, %v677
    %v681 = vadd.f32 %v680, %v678
    %v682 = vadd.f32 %v681, %v679
    %683 = vadd.xlane.f32.xlu0 %v682
    %v684 = vpop.xlane.xlu0 %683
    %v685 = vmul.f32 %v675, 0.001953125
    %v686 = vmul.f32 %v684, 0.001953125
    %v687 = vmul.f32 %v685, %v685
    %v688 = vsub.f32 %v686, %v687
    %v689 = vadd.f32 %v688, 1e-05
    %v690 = vrsqrt.pop %v689
    %v691 = vmul.f32 %v669, %v690
    %v692 = vmul.f32 %v685, %v691
    %v693 = vsub.f32 %v670, %v692
    %695 = vset.pattern.permute.xlu0 0
    %696 = vperm.xlu0 %695, %v691
    %v697 = vpop.permute.xlu0 %696
    %v699 = vmul.f32 %v582, %v697
    %v700 = vmul.f32 %v584, %v697
    %v701 = vmul.f32 %v659, %v697
    %v702 = vmul.f32 %v661, %v697
    %704 = vset.pattern.permute.xlu0 0
    %705 = vperm.xlu0 %704, %v693
    %v706 = vpop.permute.xlu0 %705
    %v708 = vadd.f32 %v699, %v706
    %v709 = vadd.f32 %v700, %v706
    %v710 = vadd.f32 %v701, %v706
    %v711 = vadd.f32 %v702, %v706
    %v712 = vmax.f32 %v708, 0.0
    %v713 = vmax.f32 %v709, 0.0
    %v714 = vmax.f32 %v710, 0.0
    %v715 = vmax.f32 %v711, 0.0
    %720 = vrot.lane.b32.xlu0 %v712, 17
    %v721 = vpop.permute.xlu0 %720
    %722 = vrot.lane.b32.xlu0 %v713, 17
    %v723 = vpop.permute.xlu0 %722
    %724 = vrot.lane.b32.xlu0 %v714, 17
    %v725 = vpop.permute.xlu0 %724
    %726 = vrot.lane.b32.xlu0 %v715, 17
    %v727 = vpop.permute.xlu0 %726
    %v728 = vsel %vm99, %v721, %v723
    %v729 = vsel %vm99, %v723, %v725
    %v730 = vsel %vm99, %v725, %v727
    %v735 = vsel %vm99, 0.0, %v721
    %v736 = vmul.f32 %v735, %v112
    %v737 = vmul.f32 %v728, %v116
    %v738 = vmul.f32 %v729, %v120
    %v739 = vmul.f32 %v730, %v124
    %740 = vrot.lane.b32.xlu0 %v712, 16
    %v741 = vpop.permute.xlu0 %740
    %742 = vrot.lane.b32.xlu0 %v713, 16
    %v743 = vpop.permute.xlu0 %742
    %744 = vrot.lane.b32.xlu0 %v714, 16
    %v745 = vpop.permute.xlu0 %744
    %746 = vrot.lane.b32.xlu0 %v715, 16
    %v747 = vpop.permute.xlu0 %746
    %v748 = vsel %vm141, %v741, %v743
    %v749 = vsel %vm141, %v743, %v745
    %v750 = vsel %vm141, %v745, %v747
    %v755 = vsel %vm141, 0.0, %v741
    %v756 = vmul.f32 %v755, %v154
    %v757 = vmul.f32 %v748, %v158
    %v758 = vmul.f32 %v749, %v162
    %v759 = vmul.f32 %v750, %v166
    %760 = vrot.lane.b32.xlu0 %v712, 15
    %v761 = vpop.permute.xlu0 %760
    %762 = vrot.lane.b32.xlu0 %v713, 15
    %v763 = vpop.permute.xlu0 %762
    %764 = vrot.lane.b32.xlu0 %v714, 15
    %v765 = vpop.permute.xlu0 %764
    %766 = vrot.lane.b32.xlu0 %v715, 15
    %v767 = vpop.permute.xlu0 %766
    %v768 = vsel %vm183, %v761, %v763
    %v769 = vsel %vm183, %v763, %v765
    %v770 = vsel %vm183, %v765, %v767
    %v775 = vsel %vm183, 0.0, %v761
    %v776 = vmul.f32 %v775, %v196
    %v777 = vmul.f32 %v768, %v200
    %v778 = vmul.f32 %v769, %v204
    %v779 = vmul.f32 %v770, %v208
    %780 = vrot.lane.b32.xlu0 %v712, 1
    %v781 = vpop.permute.xlu0 %780
    %782 = vrot.lane.b32.xlu0 %v713, 1
    %v783 = vpop.permute.xlu0 %782
    %784 = vrot.lane.b32.xlu0 %v714, 1
    %v785 = vpop.permute.xlu0 %784
    %786 = vrot.lane.b32.xlu0 %v715, 1
    %v787 = vpop.permute.xlu0 %786
    %v788 = vsel %vm225, %v781, %v783
    %v789 = vsel %vm225, %v783, %v785
    %v790 = vsel %vm225, %v785, %v787
    %v795 = vsel %vm225, 0.0, %v781
    %v796 = vmul.f32 %v795, %v238
    %v797 = vmul.f32 %v788, %v242
    %v798 = vmul.f32 %v789, %v246
    %v799 = vmul.f32 %v790, %v250
    %800 = vrot.lane.b32.xlu0 %v712, 127
    %v801 = vpop.permute.xlu0 %800
    %802 = vrot.lane.b32.xlu0 %v713, 127
    %v803 = vpop.permute.xlu0 %802
    %804 = vrot.lane.b32.xlu0 %v714, 127
    %v805 = vpop.permute.xlu0 %804
    %806 = vrot.lane.b32.xlu0 %v715, 127
    %v807 = vpop.permute.xlu0 %806
    %v808 = vsel %vm267, %v801, %v803
    %v809 = vsel %vm267, %v803, %v805
    %v810 = vsel %vm267, %v805, %v807
    %v815 = vsel %vm267, %v807, 0.0
    %v816 = vmul.f32 %v808, %v280
    %v817 = vmul.f32 %v809, %v284
    %v818 = vmul.f32 %v810, %v288
    %v819 = vmul.f32 %v815, %v292
    %820 = vrot.lane.b32.xlu0 %v712, 113
    %v821 = vpop.permute.xlu0 %820
    %822 = vrot.lane.b32.xlu0 %v713, 113
    %v823 = vpop.permute.xlu0 %822
    %824 = vrot.lane.b32.xlu0 %v714, 113
    %v825 = vpop.permute.xlu0 %824
    %826 = vrot.lane.b32.xlu0 %v715, 113
    %v827 = vpop.permute.xlu0 %826
    %v828 = vsel %vm309, %v821, %v823
    %v829 = vsel %vm309, %v823, %v825
    %v830 = vsel %vm309, %v825, %v827
    %v835 = vsel %vm309, %v827, 0.0
    %v836 = vmul.f32 %v828, %v322
    %v837 = vmul.f32 %v829, %v326
    %v838 = vmul.f32 %v830, %v330
    %v839 = vmul.f32 %v835, %v334
    %840 = vrot.lane.b32.xlu0 %v712, 112
    %v841 = vpop.permute.xlu0 %840
    %842 = vrot.lane.b32.xlu0 %v713, 112
    %v843 = vpop.permute.xlu0 %842
    %844 = vrot.lane.b32.xlu0 %v714, 112
    %v845 = vpop.permute.xlu0 %844
    %846 = vrot.lane.b32.xlu0 %v715, 112
    %v847 = vpop.permute.xlu0 %846
    %v848 = vsel %vm351, %v841, %v843
    %v849 = vsel %vm351, %v843, %v845
    %v850 = vsel %vm351, %v845, %v847
    %v855 = vsel %vm351, %v847, 0.0
    %v856 = vmul.f32 %v848, %v364
    %v857 = vmul.f32 %v849, %v368
    %v858 = vmul.f32 %v850, %v372
    %v859 = vmul.f32 %v855, %v376
    %860 = vrot.lane.b32.xlu0 %v712, 111
    %v861 = vpop.permute.xlu0 %860
    %862 = vrot.lane.b32.xlu0 %v713, 111
    %v863 = vpop.permute.xlu0 %862
    %864 = vrot.lane.b32.xlu0 %v714, 111
    %v865 = vpop.permute.xlu0 %864
    %866 = vrot.lane.b32.xlu0 %v715, 111
    %v867 = vpop.permute.xlu0 %866
    %v868 = vsel %vm393, %v861, %v863
    %v869 = vsel %vm393, %v863, %v865
    %v870 = vsel %vm393, %v865, %v867
    %v875 = vsel %vm393, %v867, 0.0
    %v876 = vmul.f32 %v868, %v406
    %v877 = vmul.f32 %v869, %v410
    %v878 = vmul.f32 %v870, %v414
    %v879 = vmul.f32 %v875, %v418
    %v880 = vld [vmem:[%s3] sm:$0xff]
    %vm881 = vcmask 588800
    %v883 = vsel %vm881, %v880, 0
    %885 = vmatprep.subr.mxu0 0.0
    %886 = vmatpush1.msra.mxu0 0.0
    %887 = vmatprep.subr.mxu0 0.0
    %888 = vmatpush1.msra.mxu0 0.0
    %889 = vmatprep.subr.mxu0 0.0
    %890 = vmatpush1.msra.mxu0 0.0
    %891 = vmatprep.subr.mxu0 0.0
    %892 = vmatpush1.msra.mxu0 0.0
    %893 = vmatprep.subr.mxu0 0.0
    %894 = vmatpush1.msra.mxu0 0.0
    %895 = vmatprep.subr.mxu0 0.0
    %896 = vmatpush1.msra.mxu0 0.0
    %897 = vmatprep.subr.mxu0 0.0
    %898 = vmatpush1.msra.mxu0 0.0
    %899 = vmatprep.subr.mxu0 %v877
    %900 = vmatpush1.msra.mxu0 %v876
    %901 = vmatprep.subr.mxu0 %v857
    %902 = vmatpush1.msra.mxu0 %v856
    %903 = vmatprep.subr.mxu0 %v837
    %904 = vmatpush1.msra.mxu0 %v836
    %905 = vmatprep.subr.mxu0 %v817
    %906 = vmatpush1.msra.mxu0 %v816
    %907 = vmatprep.subr.mxu0 %v713
    %908 = vmatpush1.msra.mxu0 %v712
    %909 = vmatprep.subr.mxu0 %v797
    %910 = vmatpush1.msra.mxu0 %v796
    %911 = vmatprep.subr.mxu0 %v777
    %912 = vmatpush1.msra.mxu0 %v776
    %913 = vmatprep.subr.mxu0 %v757
    %914 = vmatpush1.msra.mxu0 %v756
    %915 = vmatprep.subr.mxu0 %v737
    %916 = vmatpush1.msra.mxu0 %v736
    %917 = vmatprep.subr.mxu0 0.0
    %918 = vmatpush2.msra.mxu0 0.0
    %919 = vmatprep.subr.mxu0 0.0
    %920 = vmatpush2.msra.mxu0 0.0
    %921 = vmatprep.subr.mxu0 0.0
    %922 = vmatpush2.msra.mxu0 0.0
    %923 = vmatprep.subr.mxu0 0.0
    %924 = vmatpush2.msra.mxu0 0.0
    %925 = vmatprep.subr.mxu0 0.0
    %926 = vmatpush2.msra.mxu0 0.0
    %927 = vmatprep.subr.mxu0 0.0
    %928 = vmatpush2.msra.mxu0 0.0
    %929 = vmatprep.subr.mxu0 0.0
    %930 = vmatpush2.msra.mxu0 0.0
    %931 = vmatprep.subr.mxu0 0.0
    %932 = vmatpush2.msra.mxu0 0.0
    %933 = vmatprep.subr.mxu0 0.0
    %934 = vmatpush2.msra.mxu0 0.0
    %935 = vmatprep.subr.mxu0 0.0
    %936 = vmatpush2.msra.mxu0 0.0
    %937 = vmatprep.subr.mxu0 0.0
    %938 = vmatpush2.msra.mxu0 0.0
    %939 = vmatprep.subr.mxu0 0.0
    %940 = vmatpush2.msra.mxu0 0.0
    %941 = vmatprep.subr.mxu0 0.0
    %942 = vmatpush2.msra.mxu0 0.0
    %943 = vmatprep.subr.mxu0 0.0
    %944 = vmatpush2.msra.mxu0 0.0
    %945 = vmatprep.subr.mxu0 0.0
    %946 = vmatpush2.msra.mxu0 0.0
    %947 = vmatprep.subr.mxu0 0.0
    %948 = vmatpush2.msra.mxu0 0.0
    %949 = vmatprep.mubr.f32.mxu0 0.0
    %950 = vmatmul.mubr.f32.gmra.mxu0 %v883
    %v951 = vpop.f32.mrf.mxu0
    %v952 = vadd.f32 0.0, %v951
    %v953 = vpop.f32.mrf.mxu0
    %v954 = vadd.f32 0.0, %v953
    %955 = vdwg.mxu0
    %956 = vmatprep.subr.mxu0 0.0
    %957 = vmatpush1.msra.mxu0 0.0
    %958 = vmatprep.subr.mxu0 0.0
    %959 = vmatpush1.msra.mxu0 0.0
    %960 = vmatprep.subr.mxu0 0.0
    %961 = vmatpush1.msra.mxu0 0.0
    %962 = vmatprep.subr.mxu0 0.0
    %963 = vmatpush1.msra.mxu0 0.0
    %964 = vmatprep.subr.mxu0 0.0
    %965 = vmatpush1.msra.mxu0 0.0
    %966 = vmatprep.subr.mxu0 0.0
    %967 = vmatpush1.msra.mxu0 0.0
    %968 = vmatprep.subr.mxu0 0.0
    %969 = vmatpush1.msra.mxu0 0.0
    %970 = vmatprep.subr.mxu0 %v879
    %971 = vmatpush1.msra.mxu0 %v878
    %972 = vmatprep.subr.mxu0 %v859
    %973 = vmatpush1.msra.mxu0 %v858
    %974 = vmatprep.subr.mxu0 %v839
    %975 = vmatpush1.msra.mxu0 %v838
    %976 = vmatprep.subr.mxu0 %v819
    %977 = vmatpush1.msra.mxu0 %v818
    %978 = vmatprep.subr.mxu0 %v715
    %979 = vmatpush1.msra.mxu0 %v714
    %980 = vmatprep.subr.mxu0 %v799
    %981 = vmatpush1.msra.mxu0 %v798
    %982 = vmatprep.subr.mxu0 %v779
    %983 = vmatpush1.msra.mxu0 %v778
    %984 = vmatprep.subr.mxu0 %v759
    %985 = vmatpush1.msra.mxu0 %v758
    %986 = vmatprep.subr.mxu0 %v739
    %987 = vmatpush1.msra.mxu0 %v738
    %988 = vmatprep.subr.mxu0 0.0
    %989 = vmatpush2.msra.mxu0 0.0
    %990 = vmatprep.subr.mxu0 0.0
    %991 = vmatpush2.msra.mxu0 0.0
    %992 = vmatprep.subr.mxu0 0.0
    %993 = vmatpush2.msra.mxu0 0.0
    %994 = vmatprep.subr.mxu0 0.0
    %995 = vmatpush2.msra.mxu0 0.0
    %996 = vmatprep.subr.mxu0 0.0
    %997 = vmatpush2.msra.mxu0 0.0
    %998 = vmatprep.subr.mxu0 0.0
    %999 = vmatpush2.msra.mxu0 0.0
    %1000 = vmatprep.subr.mxu0 0.0
    %1001 = vmatpush2.msra.mxu0 0.0
    %1002 = vmatprep.subr.mxu0 0.0
    %1003 = vmatpush2.msra.mxu0 0.0
    %1004 = vmatprep.subr.mxu0 0.0
    %1005 = vmatpush2.msra.mxu0 0.0
    %1006 = vmatprep.subr.mxu0 0.0
    %1007 = vmatpush2.msra.mxu0 0.0
    %1008 = vmatprep.subr.mxu0 0.0
    %1009 = vmatpush2.msra.mxu0 0.0
    %1010 = vmatprep.subr.mxu0 0.0
    %1011 = vmatpush2.msra.mxu0 0.0
    %1012 = vmatprep.subr.mxu0 0.0
    %1013 = vmatpush2.msra.mxu0 0.0
    %1014 = vmatprep.subr.mxu0 0.0
    %1015 = vmatpush2.msra.mxu0 0.0
    %1016 = vmatprep.subr.mxu0 0.0
    %1017 = vmatpush2.msra.mxu0 0.0
    %1018 = vmatprep.subr.mxu0 0.0
    %1019 = vmatpush2.msra.mxu0 0.0
    %1020 = vmatprep.mubr.f32.mxu0 0.0
    %1021 = vmatmul.mubr.f32.gmra.mxu0 %v883
    %v1022 = vpop.f32.mrf.mxu0
    %v1023 = vadd.f32 0.0, %v1022
    %v1024 = vpop.f32.mrf.mxu0
    %v1025 = vadd.f32 0.0, %v1024
    %1026 = vdwg.mxu0
    %v1027 = vld [vmem:[%s6] sm:$0xff]
    %v1028 = vld [vmem:[%s7] sm:$0xff]
    %v1029 = vadd.f32 %v952, %v954
    %v1030 = vadd.f32 %v1029, %v1023
    %v1031 = vadd.f32 %v1030, %v1025
    %1032 = vadd.xlane.f32.xlu0 %v1031
    %v1033 = vpop.xlane.xlu0 %1032
    %v1034 = vmul.f32 %v952, %v952
    %v1035 = vmul.f32 %v954, %v954
    %v1036 = vmul.f32 %v1023, %v1023
    %v1037 = vmul.f32 %v1025, %v1025
    %v1038 = vadd.f32 %v1034, %v1035
    %v1039 = vadd.f32 %v1038, %v1036
    %v1040 = vadd.f32 %v1039, %v1037
    %1041 = vadd.xlane.f32.xlu0 %v1040
    %v1042 = vpop.xlane.xlu0 %1041
    %v1043 = vmul.f32 %v1033, 0.001953125
    %v1044 = vmul.f32 %v1042, 0.001953125
    %v1045 = vmul.f32 %v1043, %v1043
    %v1046 = vsub.f32 %v1044, %v1045
    %v1047 = vadd.f32 %v1046, 1e-05
    %v1048 = vrsqrt.pop %v1047
    %v1049 = vmul.f32 %v1027, %v1048
    %v1050 = vmul.f32 %v1043, %v1049
    %v1051 = vsub.f32 %v1028, %v1050
    %1053 = vset.pattern.permute.xlu0 0
    %1054 = vperm.xlu0 %1053, %v1049
    %v1055 = vpop.permute.xlu0 %1054
    %v1057 = vmul.f32 %v952, %v1055
    %v1058 = vmul.f32 %v954, %v1055
    %v1059 = vmul.f32 %v1023, %v1055
    %v1060 = vmul.f32 %v1025, %v1055
    %1062 = vset.pattern.permute.xlu0 0
    %1063 = vperm.xlu0 %1062, %v1051
    %v1064 = vpop.permute.xlu0 %1063
    %v1066 = vadd.f32 %v1057, %v1064
    %v1067 = vadd.f32 %v1058, %v1064
    %v1068 = vadd.f32 %v1059, %v1064
    %v1069 = vadd.f32 %v1060, %v1064
    %v1070 = vld [vmem:[%s8] sm:$0xff]
    %v1071 = vld [vmem:[%s9] sm:$0xff]
    %v1072 = vadd.f32 %v588, %v590
    %v1073 = vadd.f32 %v1072, %v665
    %v1074 = vadd.f32 %v1073, %v667
    %1075 = vadd.xlane.f32.xlu0 %v1074
    %v1076 = vpop.xlane.xlu0 %1075
    %v1077 = vmul.f32 %v588, %v588
    %v1078 = vmul.f32 %v590, %v590
    %v1079 = vmul.f32 %v665, %v665
    %v1080 = vmul.f32 %v667, %v667
    %v1081 = vadd.f32 %v1077, %v1078
    %v1082 = vadd.f32 %v1081, %v1079
    %v1083 = vadd.f32 %v1082, %v1080
    %1084 = vadd.xlane.f32.xlu0 %v1083
    %v1085 = vpop.xlane.xlu0 %1084
    %v1086 = vmul.f32 %v1076, 0.001953125
    %v1087 = vmul.f32 %v1085, 0.001953125
    %v1088 = vmul.f32 %v1086, %v1086
    %v1089 = vsub.f32 %v1087, %v1088
    %v1090 = vadd.f32 %v1089, 1e-05
    %v1091 = vrsqrt.pop %v1090
    %v1092 = vmul.f32 %v1070, %v1091
    %v1093 = vmul.f32 %v1086, %v1092
    %v1094 = vsub.f32 %v1071, %v1093
    %1096 = vset.pattern.permute.xlu0 0
    %1097 = vperm.xlu0 %1096, %v1092
    %v1098 = vpop.permute.xlu0 %1097
    %v1100 = vmul.f32 %v588, %v1098
    %v1101 = vmul.f32 %v590, %v1098
    %v1102 = vmul.f32 %v665, %v1098
    %v1103 = vmul.f32 %v667, %v1098
    %1105 = vset.pattern.permute.xlu0 0
    %1106 = vperm.xlu0 %1105, %v1094
    %v1107 = vpop.permute.xlu0 %1106
    %v1109 = vadd.f32 %v1100, %v1107
    %v1110 = vadd.f32 %v1101, %v1107
    %v1111 = vadd.f32 %v1102, %v1107
    %v1112 = vadd.f32 %v1103, %v1107
    %v1113 = vadd.f32 %v1066, %v1109
    %v1114 = vadd.f32 %v1067, %v1110
    %v1115 = vadd.f32 %v1068, %v1111
    %v1116 = vadd.f32 %v1069, %v1112
    %1117 = vst [vmem:[#allocation4] sm:$0xff] %v1113
    %1118 = vst [vmem:[#allocation4 + $0x8] sm:$0xff] %v1114
    %1119 = vst [vmem:[#allocation4 + $0x10] sm:$0xff] %v1115
    %1120 = vst [vmem:[#allocation4 + $0x18] sm:$0xff] %v1116
    %v1121 = vmax.f32 %v1113, 0.0
    %v1122 = vmax.f32 %v1114, 0.0
    %v1123 = vmax.f32 %v1115, 0.0
    %v1124 = vmax.f32 %v1116, 0.0
    %1125 = vst [vmem:[#allocation2] sm:$0xff] %v1121
    %1126 = vst [vmem:[#allocation2 + $0x8] sm:$0xff] %v1122
    %1127 = vst [vmem:[#allocation2 + $0x10] sm:$0xff] %v1123
    %1128 = vst [vmem:[#allocation2 + $0x18] sm:$0xff] %v1124
    // Predicated region
    $region42: #{tpu_custom_call.1} parent=1 // pred_check
      _
    $region43: #{tpu_custom_call.1} parent=1 // pred_check_branch
      %1130 = sbr.rel (0) target = $region45
    $region44: #{tpu_custom_call.1} parent=1 // pred_region
      %s1132 = ssub.s32 512, 512
      %1133 = vsyncadd [#allocation3], %s1132
      %s1135 = sshll.u32 [#allocation2], 4
      %s1136 = int_to_ptr.vmem [resolvable:$true] %s1135
      %1138 = dma.vmem_to_hbm [thread:$0]  %s1136, 512, %s10, [#allocation3]
    $region45: #{tpu_custom_call.1} parent=1 // pred_fallthru
      _
    // Predicated region
    $region46: #{tpu_custom_call.1} parent=1 // pred_check
      _
    $region47: #{tpu_custom_call.1} parent=1 // pred_check_branch
      %1140 = sbr.rel (0) target = $region49
    $region48: #{tpu_custom_call.1} parent=1 // pred_region
      %s1142 = ssub.s32 512, 512
      %1143 = vsyncadd [#allocation5], %s1142
      %s1145 = sshll.u32 [#allocation4], 4
      %s1146 = int_to_ptr.vmem [resolvable:$true] %s1145
      %1148 = dma.vmem_to_hbm [thread:$0]  %s1146, 512, %s11, [#allocation5]
    $region49: #{tpu_custom_call.1} parent=1 // pred_fallthru
      _
    // Predicated region
    $region50: #{tpu_custom_call.1} parent=1 // pred_check
      _
    $region51: #{tpu_custom_call.1} parent=1 // pred_check_branch
      %1150 = sbr.rel (0) target = $region53
    $region52: #{tpu_custom_call.1} parent=1 // pred_region
      %1151 = dma.done [#allocation3], 512
    $region53: #{tpu_custom_call.1} parent=1 // pred_fallthru
      _
    // Predicated region
    $region54: #{tpu_custom_call.1} parent=1 // pred_check
      _
    $region55: #{tpu_custom_call.1} parent=1 // pred_check_branch
      %1153 = sbr.rel (0) target = $region57
    $region56: #{tpu_custom_call.1} parent=1 // pred_region
      %1154 = dma.done [#allocation5], 512
    $region57: #{tpu_custom_call.1} parent=1 // pred_fallthru
      _
    %1155 = vsyncpa [#allocation3], 1
    %1156 = vsyncpa [#allocation5], 1

</llo_original>
